<compile_context>
chip_gen: v7x
topology: tpu7x:2x2x1
jax: 0.10.0
libtpu: 0.0.40
codegen_flags: <defaults>
</compile_context>

<pallas_src>
import math

import jax
import jax.numpy as jnp
from jax import lax
from jax.experimental import pallas as pl
from jax.experimental.pallas import tpu as pltpu


def _interp_matrix(n_in, n_out):
    """(n_out, n_in) linear-interpolation matrix, align_corners=True semantics."""
    if n_out == 1:
        src = jnp.zeros((1,), jnp.float32)
    else:
        src = jnp.arange(n_out, dtype=jnp.float32) * (float(n_in - 1) / float(n_out - 1))
    lo = jnp.clip(jnp.floor(src).astype(jnp.int32), 0, n_in - 1)
    hi = jnp.minimum(lo + 1, n_in - 1)
    frac = src - lo.astype(jnp.float32)
    rows = jnp.arange(n_out)
    m = jnp.zeros((n_out, n_in), jnp.float32)
    m = m.at[rows, lo].add(1.0 - frac)
    m = m.at[rows, hi].add(frac)
    return m


def _up_bilinear_kernel(x_ref, aht_ref, awt_ref, o_ref):
    # x_ref  : (Bt, C, H, W)
    # aht_ref: (H, Ho)  = A_h^T
    # awt_ref: (W, Wo)  = A_w^T
    # o_ref  : (Bt, C, Ho, Wo)
    bt, c, h, w = x_ref.shape
    ho = aht_ref.shape[1]
    wo = awt_ref.shape[1]
    n = bt * c

    x = x_ref[...].astype(jnp.float32)
    aht = aht_ref[...]
    awt = awt_ref[...]

    # W interpolation: contract the lane (minor) axis with A_w^T.
    y = jnp.dot(x.reshape(n * h, w), awt,
                preferred_element_type=jnp.float32,
                precision=lax.Precision.HIGHEST)             # (N*H, Wo)
    # H interpolation: bring H to the lane axis (last-two-dims transpose), matmul.
    y = jnp.swapaxes(y.reshape(n, h, wo), 1, 2)              # (N, Wo, H)
    z = jnp.dot(y.reshape(n * wo, h), aht,
                preferred_element_type=jnp.float32,
                precision=lax.Precision.HIGHEST)             # (N*Wo, Ho)
    z = jnp.swapaxes(z.reshape(n, wo, ho), 1, 2)             # (N, Ho, Wo)
    o_ref[...] = z.reshape(bt, c, ho, wo).astype(o_ref.dtype)


def _pick_batch_block(batch, per_batch_bytes, limit_bytes=2 * 1024 * 1024):
    """Largest divisor of `batch` whose (in+out) block stays under `limit_bytes`,
    while keeping >=2 grid steps when batch > 1 (keeps a parallel axis for v7x)."""
    best = 1
    for bt in range(1, batch + 1):
        if batch % bt:
            continue
        steps = batch // bt
        if bt * per_batch_bytes <= limit_bytes and (steps >= 2 or batch == 1):
            best = bt
    return best


def up(x, scale_factor, mode="bilinear", align_corners=True, batch_block=None):
    """Pallas equivalent of Up.forward (F.interpolate with align_corners=True)."""
    if mode != "bilinear" or not align_corners:
        # TODO(synk): 'nearest'/'bicubic' modes and align_corners=False are not implemented;
        # the module is used with bilinear + align_corners=True.
        raise NotImplementedError("only mode='bilinear', align_corners=True is implemented")

    B, C, H, W = x.shape
    Ho = int(math.floor(H * scale_factor))
    Wo = int(math.floor(W * scale_factor))

    aht = _interp_matrix(H, Ho).T.astype(jnp.float32)   # (H, Ho)
    awt = _interp_matrix(W, Wo).T.astype(jnp.float32)   # (W, Wo)

    itemsize = jnp.dtype(x.dtype).itemsize
    per_batch_bytes = (C * H * W + C * Ho * Wo) * itemsize
    if batch_block is None:
        batch_block = _pick_batch_block(B, per_batch_bytes)
    assert B % batch_block == 0, "batch_block must divide the batch"

    grid = (B // batch_block,)
    out = pl.pallas_call(
        _up_bilinear_kernel,
        out_shape=jax.ShapeDtypeStruct((B, C, Ho, Wo), x.dtype),
        grid_spec=pl.GridSpec(
            grid=grid,
            in_specs=[
                pl.BlockSpec((batch_block, C, H, W), lambda i: (i, 0, 0, 0)),
                pl.BlockSpec((H, Ho), lambda i: (0, 0)),
                pl.BlockSpec((W, Wo), lambda i: (0, 0)),
            ],
            out_specs=pl.BlockSpec((batch_block, C, Ho, Wo), lambda i: (i, 0, 0, 0)),
        ),
        compiler_params=pltpu.CompilerParams(
            dimension_semantics=("parallel",),
        ),
    )(x, aht, awt)
    return out


def up_ref(x, scale_factor, mode="bilinear", align_corners=True):
    """Pure-JAX reference mirroring torch.nn.functional.interpolate
    (mode='bilinear', align_corners=True) via explicit gathers."""
    B, C, H, W = x.shape
    Ho = int(math.floor(H * scale_factor))
    Wo = int(math.floor(W * scale_factor))

    def coords(n_in, n_out):
        if n_out == 1:
            src = jnp.zeros((1,), jnp.float32)
        else:
            src = jnp.arange(n_out, dtype=jnp.float32) * (float(n_in - 1) / float(n_out - 1))
        lo = jnp.clip(jnp.floor(src).astype(jnp.int32), 0, n_in - 1)
        hi = jnp.minimum(lo + 1, n_in - 1)
        frac = src - lo.astype(jnp.float32)
        return lo, hi, frac

    hlo, hhi, hf = coords(H, Ho)
    wlo, whi, wf = coords(W, Wo)
    xh = (x[:, :, hlo, :] * (1.0 - hf)[None, None, :, None]
          + x[:, :, hhi, :] * hf[None, None, :, None])
    out = (xh[:, :, :, wlo] * (1.0 - wf)[None, None, None, :]
           + xh[:, :, :, whi] * wf[None, None, None, :])
    return out.astype(x.dtype)


if __name__ == "__main__":
    # Module config implied by Up(scale_factor=2, mode='bilinear', align_corners=True).
    B, C, H, W = 2, 4, 16, 16
    scale = 2

    key = jax.random.PRNGKey(0)
    x = jax.random.normal(key, (B, C, H, W), dtype=jnp.float32)

    out = jax.block_until_ready(up(x, scale, mode="bilinear", align_corners=True))
    ref = jax.block_until_ready(up_ref(x, scale))

    assert out.shape == (B, C, H * scale, W * scale) and out.dtype == x.dtype
    assert jnp.allclose(out, ref, atol=1e-4, rtol=1e-4), "mismatch vs reference"
    print("KERNEL_OK")
</pallas_src>

<mosaic_0001>
module attributes {stable_mosaic.version = 11 : i64} {
  func.func @_up_bilinear_kernel(%arg0: i32, %arg1: memref<1x4x16x16xf32, #tpu.memory_space<vmem>>, %arg2: memref<16x32xf32, #tpu.memory_space<vmem>>, %arg3: memref<16x32xf32, #tpu.memory_space<vmem>>, %arg4: memref<1x4x32x32xf32, #tpu.memory_space<vmem>>) attributes {dimension_semantics = [#tpu.dimension_semantics<parallel>], iteration_bounds = array<i64: 2>, scalar_prefetch = 0 : i64, scratch_operands = 0 : i64, tpu.core_type = #tpu.core_type<tc>, window_params = [{transform_indices = @transform_0, window_bounds = array<i64: 1, 4, 16, 16>}, {pipeline_mode = #tpu.pipeline_mode<synchronous>, transform_indices = @transform_1, window_bounds = array<i64: 16, 32>}, {pipeline_mode = #tpu.pipeline_mode<synchronous>, transform_indices = @transform_2, window_bounds = array<i64: 16, 32>}, {transform_indices = @transform_3, window_bounds = array<i64: 1, 4, 32, 32>}]} {
    %c0 = arith.constant 0 : index
    %c0_0 = arith.constant 0 : index
    %c0_1 = arith.constant 0 : index
    %c0_2 = arith.constant 0 : index
    %0 = vector.load %arg1[%c0, %c0_0, %c0_1, %c0_2] : memref<1x4x16x16xf32, #tpu.memory_space<vmem>>, vector<1x4x16x16xf32>
    %c0_3 = arith.constant 0 : index
    %c0_4 = arith.constant 0 : index
    %1 = vector.load %arg2[%c0_3, %c0_4] : memref<16x32xf32, #tpu.memory_space<vmem>>, vector<16x32xf32>
    %c0_5 = arith.constant 0 : index
    %c0_6 = arith.constant 0 : index
    %2 = vector.load %arg3[%c0_5, %c0_6] : memref<16x32xf32, #tpu.memory_space<vmem>>, vector<16x32xf32>
    %3 = vector.shape_cast %0 : vector<1x4x16x16xf32> to vector<64x16xf32>
    %cst = arith.constant dense<0.000000e+00> : vector<64x32xf32>
    %4 = tpu.matmul %3, %2, %cst {dimension_numbers = #tpu.dot_dimension_numbers<[1], [0], [0], [1], [0, 0, 1, 1], [], []>, precision = #tpu.contract_precision<fp32>} : vector<64x16xf32>, vector<16x32xf32>, vector<64x32xf32> -> vector<64x32xf32>
    %5 = vector.shape_cast %4 : vector<64x32xf32> to vector<4x16x32xf32>
    %6 = tpu.transpose %5, [0, 2, 1] : vector<4x16x32xf32> -> vector<4x32x16xf32>
    %7 = vector.shape_cast %6 : vector<4x32x16xf32> to vector<128x16xf32>
    %cst_7 = arith.constant dense<0.000000e+00> : vector<128x32xf32>
    %8 = tpu.matmul %7, %1, %cst_7 {dimension_numbers = #tpu.dot_dimension_numbers<[1], [0], [0], [1], [0, 0, 1, 1], [], []>, precision = #tpu.contract_precision<fp32>} : vector<128x16xf32>, vector<16x32xf32>, vector<128x32xf32> -> vector<128x32xf32>
    %9 = vector.shape_cast %8 : vector<128x32xf32> to vector<4x32x32xf32>
    %10 = tpu.transpose %9, [0, 2, 1] : vector<4x32x32xf32> -> vector<4x32x32xf32>
    %11 = vector.shape_cast %10 : vector<4x32x32xf32> to vector<1x4x32x32xf32>
    %c0_8 = arith.constant 0 : index
    %c0_9 = arith.constant 0 : index
    %c0_10 = arith.constant 0 : index
    %c0_11 = arith.constant 0 : index
    %12 = vector.load %arg4[%c0_8, %c0_9, %c0_10, %c0_11] : memref<1x4x32x32xf32, #tpu.memory_space<vmem>>, vector<1x4x32x32xf32>
    tpu.vector_store %arg4[%c0_8, %c0_9, %c0_10, %c0_11], %11 {strides = array<i32>} : memref<1x4x32x32xf32, #tpu.memory_space<vmem>>, vector<1x4x32x32xf32>,
    return
  }
  func.func @transform_0(%arg0: i32) -> (i32, i32, i32, i32) {
    %c0_i32 = arith.constant 0 : i32
    %c0_i32_0 = arith.constant 0 : i32
    %c0_i32_1 = arith.constant 0 : i32
    %c0_i32_2 = arith.constant 0 : i32
    return %arg0, %c0_i32, %c0_i32_0, %c0_i32_1 : i32, i32, i32, i32
  }
  func.func @transform_1(%arg0: i32) -> (i32, i32) {
    %c0_i32 = arith.constant 0 : i32
    %c0_i32_0 = arith.constant 0 : i32
    %c0_i32_1 = arith.constant 0 : i32
    return %c0_i32, %c0_i32_0 : i32, i32
  }
  func.func @transform_2(%arg0: i32) -> (i32, i32) {
    %c0_i32 = arith.constant 0 : i32
    %c0_i32_0 = arith.constant 0 : i32
    %c0_i32_1 = arith.constant 0 : i32
    return %c0_i32, %c0_i32_0 : i32, i32
  }
  func.func @transform_3(%arg0: i32) -> (i32, i32, i32, i32) {
    %c0_i32 = arith.constant 0 : i32
    %c0_i32_0 = arith.constant 0 : i32
    %c0_i32_1 = arith.constant 0 : i32
    %c0_i32_2 = arith.constant 0 : i32
    return %arg0, %c0_i32, %c0_i32_0, %c0_i32_1 : i32, i32, i32, i32
  }
}

</mosaic_0001>

<llo_original>
// kernel: tpu_custom_call.1
$region0: #{tpu_custom_call.1}
  #allocation0 [shape = 'u32[]', space=smem, size = 0x4, offset = 0x4, fixed_abs, tag = 'smem constant byte address 0x4 - core index']
  #allocation1 [shape = 'u32[144,128]{1,0:T(1,128)}', space=vmem, size = 0x12000, scoped, tag = 'internal scratch']
  %s0 = inlined_call_operand.hbm [shape: f32[2,4,16,16], index: 0, kind: input, shape index: {}]
  %s1 = inlined_call_operand.hbm [shape: f32[16,32], index: 1, kind: input, shape index: {}]
  %s2 = inlined_call_operand.hbm [shape: f32[16,32], index: 2, kind: input, shape index: {}]
  %s3 = inlined_call_operand.hbm [shape: f32[2,4,32,32], index: 3, kind: output, shape index: {}]
  %s4 = sld [smem:[#allocation0]]
  $region57: #{tpu_custom_call.1} parent=0
    _
  %s6 = ssub.s32 1, %s4
  %s7 = scalar_select 0, %s6, %s4
  $region1: #{tpu_custom_call.1} parent=0
    #allocation2 [shape = 'u8[65536]{0}', space=vmem, size = 0x10000, scoped, tag = 'input window, operand 0']
    #allocation3 [shape = 's32[2]{0}', space=sflag, size = 0x8, scoped, tag = 'scoped memory for tpu_custom_call.1']
    #allocation4 [shape = 's32[2]{0}', space=sflag, size = 0x8, scoped, tag = 'scoped memory for tpu_custom_call.1']
    #allocation5 [shape = 'u8[8192]{0}', space=vmem, size = 0x2000, scoped, tag = 'input window, operand 1, single buffered']
    #allocation6 [shape = 's32[1]{0}', space=sflag, size = 0x4, scoped, tag = 'scoped memory for tpu_custom_call.1']
    #allocation7 [shape = 'u8[8192]{0}', space=vmem, size = 0x2000, scoped, tag = 'input window, operand 2, single buffered']
    #allocation8 [shape = 'u8[131072]{0}', space=vmem, size = 0x20000, scoped, tag = 'output window, operand 0']
    %8 = vsyncpa [#allocation3], 0
    %s9 = scalar_lea.sflag [#allocation3], 1
    %10 = vsyncpa %s9, 0
    %11 = vsyncpa [#allocation6], 0
    %12 = vsyncpa [#allocation4], 0
    %s13 = scalar_lea.sflag [#allocation4], 1
    %14 = vsyncpa %s13, 0
    loop: start=0, step=1, limit=4
    $region2: #{tpu_custom_call.1} parent=1 // loop_pre_header
      _
    $region3: #{tpu_custom_call.1} parent=1 // loop_header
      %s16 = sphi 0, %s20
      %p17 = scmp.ge.s32.totalorder %s16, 4
      %s26 = sphi 0, %s28
      %s29 = sphi 0, %s26
      %s30 = sphi 0, %s29
      %s46 = sphi 0, %s30
      %s50 = sphi 0, %s50
      %s52 = sphi 0, %s50
      %s53 = sphi 0, %s52
      %s67 = sphi 0, %s53
      %s71 = sphi 0, %s71
      %s73 = sphi 0, %s71
      %s74 = sphi 0, %s73
      %s88 = sphi 0, %s74
      %s94 = sphi 0, %s96
      %s97 = sphi 0, %s94
      %s98 = sphi 0, %s97
      %s114 = sphi 0, %s98
    $region4: #{tpu_custom_call.1} parent=1 // loop_header_branch
      %19 = sbr.rel (%p17) target = $region8
    $region5: #{tpu_custom_call.1} parent=1 // loop_body
      %s21 = ssub.s32 %s16, 1
      %s22 = ssub.s32 %s16, 2
      %s23 = sadd.s32 %s16, 1
      %s24 = ssub.s32 %s16, %s23
      %p25 = scmp.eq.s32.totalorder %s24, 0
      %s27 = sadd.s32 %s26, 1
      %s28 = scalar_select %p25, %s26, %s27
      %p31 = pneg %p25
      %p32 = scmp.eq.s32.totalorder %s16, 1
      %p33 = por %p31, %p32
      %p34 = scmp.ne.s32.totalorder %s26, %s29
      %p35 = scmp.eq.s32.totalorder %s16, 0
      %p36 = por %p34, %p35
      %p37 = scmp.ne.s32.totalorder %s26, %s29
      %p38 = scmp.eq.s32.totalorder %s21, 1
      %p39 = por %p37, %p38
      %p40 = scmp.ne.s32.totalorder %s29, %s30
      %p41 = scmp.eq.s32.totalorder %s21, 0
      %p42 = por %p40, %p41
      %p43 = scmp.ne.s32.totalorder %s29, %s30
      %p44 = scmp.eq.s32.totalorder %s22, 1
      %p45 = por %p43, %p44
      %p47 = scmp.ne.s32.totalorder %s30, %s46
      %p48 = scmp.eq.s32.totalorder %s22, 0
      %p49 = por %p47, %p48
      %s51 = sadd.s32 %s50, 1
      %p54 = scmp.eq.s32.totalorder %s16, 1
      %p55 = scmp.ne.s32.totalorder %s50, %s52
      %p56 = scmp.eq.s32.totalorder %s16, 0
      %p57 = por %p55, %p56
      %p58 = scmp.ne.s32.totalorder %s50, %s52
      %p59 = scmp.eq.s32.totalorder %s21, 1
      %p60 = por %p58, %p59
      %p61 = scmp.ne.s32.totalorder %s52, %s53
      %p62 = scmp.eq.s32.totalorder %s21, 0
      %p63 = por %p61, %p62
      %p64 = scmp.ne.s32.totalorder %s52, %s53
      %p65 = scmp.eq.s32.totalorder %s22, 1
      %p66 = por %p64, %p65
      %p68 = scmp.ne.s32.totalorder %s53, %s67
      %p69 = scmp.eq.s32.totalorder %s22, 0
      %p70 = por %p68, %p69
      %s72 = sadd.s32 %s71, 1
      %p75 = scmp.eq.s32.totalorder %s16, 1
      %p76 = scmp.ne.s32.totalorder %s71, %s73
      %p77 = scmp.eq.s32.totalorder %s16, 0
      %p78 = por %p76, %p77
      %p79 = scmp.ne.s32.totalorder %s71, %s73
      %p80 = scmp.eq.s32.totalorder %s21, 1
      %p81 = por %p79, %p80
      %p82 = scmp.ne.s32.totalorder %s73, %s74
      %p83 = scmp.eq.s32.totalorder %s21, 0
      %p84 = por %p82, %p83
      %p85 = scmp.ne.s32.totalorder %s73, %s74
      %p86 = scmp.eq.s32.totalorder %s22, 1
      %p87 = por %p85, %p86
      %p89 = scmp.ne.s32.totalorder %s74, %s88
      %p90 = scmp.eq.s32.totalorder %s22, 0
      %p91 = por %p89, %p90
      %s92 = ssub.s32 %s16, %s23
      %p93 = scmp.eq.s32.totalorder %s92, 0
      %s95 = sadd.s32 %s94, 1
      %s96 = scalar_select %p93, %s94, %s95
      %p99 = pneg %p93
      %p100 = scmp.eq.s32.totalorder %s16, 1
      %p101 = por %p99, %p100
      %p102 = scmp.ne.s32.totalorder %s94, %s97
      %p103 = scmp.eq.s32.totalorder %s16, 0
      %p104 = por %p102, %p103
      %p105 = scmp.ne.s32.totalorder %s94, %s97
      %p106 = scmp.eq.s32.totalorder %s21, 1
      %p107 = por %p105, %p106
      %p108 = scmp.ne.s32.totalorder %s97, %s98
      %p109 = scmp.eq.s32.totalorder %s21, 0
      %p110 = por %p108, %p109
      %p111 = scmp.ne.s32.totalorder %s97, %s98
      %p112 = scmp.eq.s32.totalorder %s22, 1
      %p113 = por %p111, %p112
      %p115 = scmp.ne.s32.totalorder %s98, %s114
      %p116 = scmp.eq.s32.totalorder %s22, 0
      %p117 = por %p115, %p116
      %p118 = scmp.le.s32.totalorder 1, %s16
      %p119 = scmp.lt.s32.totalorder %s16, 3
      %p120 = pnand %p118, %p119
      %p121 = pneg %p120
      // Predicated region
      $region9: #{tpu_custom_call.1} parent=5 // pred_check
        _
      $region10: #{tpu_custom_call.1} parent=5 // pred_check_branch
        %123 = sbr.rel (%p120) target = $region12
      $region11: #{tpu_custom_call.1} parent=5 // pred_region
        %s124 = ssub.s32 %s16, 1
        // Predicated region
        $region13: #{tpu_custom_call.1} parent=11 // pred_check
          %p125 = pneg %p63
        $region14: #{tpu_custom_call.1} parent=11 // pred_check_branch
          %127 = sbr.rel (%p125) target = $region16
        $region15: #{tpu_custom_call.1} parent=11 // pred_region
          %s129 = ssub.s32 256, 256
          %130 = vsyncadd [#allocation6], %s129
          %s131 = sshll.u32 [#allocation5], 4
          %s132 = int_to_ptr.vmem [resolvable:$true] %s131
          %137 = dma.hbm_to_vmem [thread:$0]  %s1, 256, %s132, [#allocation6], 128, 128, 8
        $region16: #{tpu_custom_call.1} parent=11 // pred_fallthru
          _
        // Predicated region
        $region17: #{tpu_custom_call.1} parent=11 // pred_check
          %p138 = pneg %p84
        $region18: #{tpu_custom_call.1} parent=11 // pred_check_branch
          %140 = sbr.rel (%p138) target = $region20
        $region19: #{tpu_custom_call.1} parent=11 // pred_region
          %s142 = ssub.s32 256, 256
          %143 = vsyncadd [#allocation6], %s142
          %s144 = sshll.u32 [#allocation7], 4
          %s145 = int_to_ptr.vmem [resolvable:$true] %s144
          %150 = dma.hbm_to_vmem [thread:$0]  %s2, 256, %s145, [#allocation6], 128, 128, 8
        $region20: #{tpu_custom_call.1} parent=11 // pred_fallthru
          _
      $region12: #{tpu_custom_call.1} parent=5 // pred_fallthru
        _
      %p151 = scmp.lt.s32.totalorder %s16, 2
      // Predicated region
      $region21: #{tpu_custom_call.1} parent=5 // pred_check
        %p152 = pneg %p151
      $region22: #{tpu_custom_call.1} parent=5 // pred_check_branch
        %154 = sbr.rel (%p152) target = $region24
      $region23: #{tpu_custom_call.1} parent=5 // pred_region
        // Predicated region
        $region25: #{tpu_custom_call.1} parent=23 // pred_check
          %p155 = pneg %p36
        $region26: #{tpu_custom_call.1} parent=23 // pred_check_branch
          %157 = sbr.rel (%p155) target = $region28
        $region27: #{tpu_custom_call.1} parent=23 // pred_region
          %s158 = sand.u32 %s26, 1
          %s159 = scalar_lea.sflag [#allocation3], %s158
          %s160 = sand.u32 %s26, 1
          %s161 = smul.addr %s160, 64
          %s162 = scalar_lea.vmem [#allocation2], %s161
          %s164 = ssub.s32 1024, 1024
          %165 = vsyncadd %s159, %s164
          %s166 = smul.addr %s16, 8
          %s167 = smul.addr %s166, 128
          %s168 = scalar_lea.hbm %s0, %s167
          %s169 = sshll.u32 %s162, 4
          %s170 = int_to_ptr.vmem [resolvable:$true] %s169
          %175 = dma.hbm_to_vmem [thread:$0]  %s168, 1024, %s170, %s159, 128, 128, 8
        $region28: #{tpu_custom_call.1} parent=23 // pred_fallthru
          _
      $region24: #{tpu_custom_call.1} parent=5 // pred_fallthru
        _
      %p176 = scmp.le.s32.totalorder 1, %s16
      %p177 = scmp.lt.s32.totalorder %s16, 3
      %p178 = pnand %p176, %p177
      %p179 = pneg %p178
      // Predicated region
      $region29: #{tpu_custom_call.1} parent=5 // pred_check
        _
      $region30: #{tpu_custom_call.1} parent=5 // pred_check_branch
        %181 = sbr.rel (%p178) target = $region32
      $region31: #{tpu_custom_call.1} parent=5 // pred_region
        %s182 = ssub.s32 %s16, 1
        %s183 = sand.u32 %s29, 1
        %s184 = scalar_lea.sflag [#allocation3], %s183
        %s185 = sand.u32 %s29, 1
        %s186 = smul.addr %s185, 64
        %s187 = scalar_lea.vmem [#allocation2], %s186
        // Predicated region
        $region33: #{tpu_custom_call.1} parent=31 // pred_check
          %p188 = pneg %p42
        $region34: #{tpu_custom_call.1} parent=31 // pred_check_branch
          %190 = sbr.rel (%p188) target = $region36
        $region35: #{tpu_custom_call.1} parent=31 // pred_region
          %191 = dma.done %s184, 1024
        $region36: #{tpu_custom_call.1} parent=31 // pred_fallthru
          _
        // Predicated region
        $region37: #{tpu_custom_call.1} parent=31 // pred_check
          %p192 = pneg %p63
        $region38: #{tpu_custom_call.1} parent=31 // pred_check_branch
          %194 = sbr.rel (%p192) target = $region40
        $region39: #{tpu_custom_call.1} parent=31 // pred_region
          %195 = dma.done [#allocation6], 256
        $region40: #{tpu_custom_call.1} parent=31 // pred_fallthru
          _
        // Predicated region
        $region41: #{tpu_custom_call.1} parent=31 // pred_check
          %p196 = pneg %p84
        $region42: #{tpu_custom_call.1} parent=31 // pred_check_branch
          %198 = sbr.rel (%p196) target = $region44
        $region43: #{tpu_custom_call.1} parent=31 // pred_region
          %199 = dma.done [#allocation6], 256
        $region44: #{tpu_custom_call.1} parent=31 // pred_fallthru
          _
        %s200 = sand.u32 %s29, 1
        %s201 = scalar_lea.sflag [#allocation3], %s200
        %s202 = sand.u32 %s29, 1
        %s203 = smul.addr %s202, 64
        %s204 = scalar_lea.vmem [#allocation2], %s203
        %p205 = pneg %p42
        %p206 = pneg %p39
        %p207 = pneg %p63
        %p208 = pneg %p60
        %p209 = pneg %p84
        %p210 = pneg %p81
        %p211 = pneg %p110
        %p212 = pneg %p107
        %s213 = sand.u32 %s97, 1
        %s214 = scalar_lea.sflag [#allocation4], %s213
        %s215 = sand.u32 %s97, 1
        %s216 = smul.addr %s215, 128
        %s217 = scalar_lea.vmem [#allocation8], %s216
        %v218 = vld [vmem:[%s187] sm:$0xff]
        %v219 = vld [vmem:[%s187 + $0x8] sm:$0xff]
        %v220 = vld [vmem:[%s187 + $0x10] sm:$0xff]
        %v221 = vld [vmem:[%s187 + $0x18] sm:$0xff]
        %v222 = vld [vmem:[%s187 + $0x20] sm:$0xff]
        %v223 = vld [vmem:[%s187 + $0x28] sm:$0xff]
        %v224 = vld [vmem:[%s187 + $0x30] sm:$0xff]
        %v225 = vld [vmem:[%s187 + $0x38] sm:$0xff]
        %v226 = vld [vmem:[#allocation5] sm:$0xff]
        %v227 = vld [vmem:[#allocation5 + $0x8] sm:$0xff]
        %v228 = vld [vmem:[#allocation7] sm:$0xff]
        %v229 = vld [vmem:[#allocation7 + $0x8] sm:$0xff]
        %vm230 = vcmask 130048
        %v232 = vsel %vm230, %v218, 0
        %v235 = vsel %vm230, %v219, 0
        %v238 = vsel %vm230, %v220, 0
        %v241 = vsel %vm230, %v221, 0
        %v244 = vsel %vm230, %v222, 0
        %v247 = vsel %vm230, %v223, 0
        %v250 = vsel %vm230, %v224, 0
        %v253 = vsel %vm230, %v225, 0
        %255 = vmatprep.subr.mxu0 0.0
        %v256 = vand.u32 %v228, 4294901760
        %257 = vmatpush1.msra.mxu0 %v256
        %258 = vmatprep.subr.mxu0 0.0
        %v259 = vand.u32 %v229, 4294901760
        %260 = vmatpush1.msra.mxu0 %v259
        %261 = vmatprep.subr.mxu0 0.0
        %262 = vmatpush1.msra.mxu0 0.0
        %263 = vmatprep.subr.mxu0 0.0
        %264 = vmatpush1.msra.mxu0 0.0
        %265 = vmatprep.subr.mxu0 0.0
        %266 = vmatpush1.msra.mxu0 0.0
        %267 = vmatprep.subr.mxu0 0.0
        %268 = vmatpush1.msra.mxu0 0.0
        %269 = vmatprep.subr.mxu0 0.0
        %270 = vmatpush1.msra.mxu0 0.0
        %271 = vmatprep.subr.mxu0 0.0
        %272 = vmatpush1.msra.mxu0 0.0
        %273 = vmatprep.subr.mxu0 0.0
        %274 = vmatpush1.msra.mxu0 0.0
        %275 = vmatprep.subr.mxu0 0.0
        %276 = vmatpush1.msra.mxu0 0.0
        %277 = vmatprep.subr.mxu0 0.0
        %278 = vmatpush1.msra.mxu0 0.0
        %279 = vmatprep.subr.mxu0 0.0
        %280 = vmatpush1.msra.mxu0 0.0
        %281 = vmatprep.subr.mxu0 0.0
        %282 = vmatpush1.msra.mxu0 0.0
        %283 = vmatprep.subr.mxu0 0.0
        %284 = vmatpush1.msra.mxu0 0.0
        %285 = vmatprep.subr.mxu0 0.0
        %286 = vmatpush1.msra.mxu0 0.0
        %287 = vmatprep.subr.mxu0 0.0
        %288 = vmatpush1.msra.mxu0 0.0
        %289 = vmatprep.subr.mxu0 0.0
        %290 = vmatpush1.msra.mxu0 0.0
        %291 = vmatprep.subr.mxu0 0.0
        %292 = vmatpush1.msra.mxu0 0.0
        %293 = vmatprep.subr.mxu0 0.0
        %294 = vmatpush1.msra.mxu0 0.0
        %295 = vmatprep.subr.mxu0 0.0
        %296 = vmatpush1.msra.mxu0 0.0
        %297 = vmatprep.subr.mxu0 0.0
        %298 = vmatpush1.msra.mxu0 0.0
        %299 = vmatprep.subr.mxu0 0.0
        %300 = vmatpush1.msra.mxu0 0.0
        %301 = vmatprep.subr.mxu0 0.0
        %302 = vmatpush1.msra.mxu0 0.0
        %303 = vmatprep.subr.mxu0 0.0
        %304 = vmatpush1.msra.mxu0 0.0
        %305 = vmatprep.subr.mxu0 0.0
        %306 = vmatpush1.msra.mxu0 0.0
        %307 = vmatprep.subr.mxu0 0.0
        %308 = vmatpush1.msra.mxu0 0.0
        %309 = vmatprep.subr.mxu0 0.0
        %310 = vmatpush1.msra.mxu0 0.0
        %311 = vmatprep.subr.mxu0 0.0
        %312 = vmatpush1.msra.mxu0 0.0
        %313 = vmatprep.subr.mxu0 0.0
        %314 = vmatpush1.msra.mxu0 0.0
        %315 = vmatprep.subr.mxu0 0.0
        %316 = vmatpush1.msra.mxu0 0.0
        %317 = vmatprep.subr.mxu0 0.0
        %318 = vmatpush1.msra.mxu0 0.0
        %319 = vmatprep.subr.mxu0 0.0
        %320 = vmatpush1.msra.mxu0 0.0
        %321 = vmatprep.mubr.f32.mxu0 0.0
        %v322 = vand.u32 %v232, 4294901760
        %v323 = vsub.f32 %v232, %v322
        %v324 = vand.u32 %v323, 4294901760
        %v325 = vsub.f32 %v323, %v324
        %v326 = vand.u32 %v325, 4294901760
        %327 = vmatmul.mubr.f32.gmra.mrb[0].mxu0 %v326
        %v328 = vpop.f32.mrb[0].mxu0
        %v329 = vadd.f32 0.0, %v328
        %v330 = vpop.f32.mrb[0].mxu0
        %331 = vmatprep.mubr.f32.mxu0 0.0
        %v332 = vand.u32 %v235, 4294901760
        %v333 = vsub.f32 %v235, %v332
        %v334 = vand.u32 %v333, 4294901760
        %v335 = vsub.f32 %v333, %v334
        %v336 = vand.u32 %v335, 4294901760
        %337 = vmatmul.mubr.f32.gmra.mrb[0].mxu0 %v336
        %v338 = vpop.f32.mrb[0].mxu0
        %v339 = vadd.f32 0.0, %v338
        %v340 = vpop.f32.mrb[0].mxu0
        %341 = vmatprep.mubr.f32.mxu0 0.0
        %v342 = vand.u32 %v238, 4294901760
        %v343 = vsub.f32 %v238, %v342
        %v344 = vand.u32 %v343, 4294901760
        %v345 = vsub.f32 %v343, %v344
        %v346 = vand.u32 %v345, 4294901760
        %347 = vmatmul.mubr.f32.gmra.mrb[0].mxu0 %v346
        %v348 = vpop.f32.mrb[0].mxu0
        %v349 = vadd.f32 0.0, %v348
        %v350 = vpop.f32.mrb[0].mxu0
        %351 = vmatprep.mubr.f32.mxu0 0.0
        %v352 = vand.u32 %v241, 4294901760
        %v353 = vsub.f32 %v241, %v352
        %v354 = vand.u32 %v353, 4294901760
        %v355 = vsub.f32 %v353, %v354
        %v356 = vand.u32 %v355, 4294901760
        %357 = vmatmul.mubr.f32.gmra.mrb[0].mxu0 %v356
        %v358 = vpop.f32.mrb[0].mxu0
        %v359 = vadd.f32 0.0, %v358
        %v360 = vpop.f32.mrb[0].mxu0
        %361 = vmatprep.mubr.f32.mxu0 0.0
        %v362 = vand.u32 %v244, 4294901760
        %v363 = vsub.f32 %v244, %v362
        %v364 = vand.u32 %v363, 4294901760
        %v365 = vsub.f32 %v363, %v364
        %v366 = vand.u32 %v365, 4294901760
        %367 = vmatmul.mubr.f32.gmra.mrb[0].mxu0 %v366
        %v368 = vpop.f32.mrb[0].mxu0
        %v369 = vadd.f32 0.0, %v368
        %v370 = vpop.f32.mrb[0].mxu0
        %371 = vmatprep.mubr.f32.mxu0 0.0
        %v372 = vand.u32 %v247, 4294901760
        %v373 = vsub.f32 %v247, %v372
        %v374 = vand.u32 %v373, 4294901760
        %v375 = vsub.f32 %v373, %v374
        %v376 = vand.u32 %v375, 4294901760
        %377 = vmatmul.mubr.f32.gmra.mrb[0].mxu0 %v376
        %v378 = vpop.f32.mrb[0].mxu0
        %v379 = vadd.f32 0.0, %v378
        %v380 = vpop.f32.mrb[0].mxu0
        %381 = vmatprep.mubr.f32.mxu0 0.0
        %v382 = vand.u32 %v250, 4294901760
        %v383 = vsub.f32 %v250, %v382
        %v384 = vand.u32 %v383, 4294901760
        %v385 = vsub.f32 %v383, %v384
        %v386 = vand.u32 %v385, 4294901760
        %387 = vmatmul.mubr.f32.gmra.mrb[0].mxu0 %v386
        %v388 = vpop.f32.mrb[0].mxu0
        %v389 = vadd.f32 0.0, %v388
        %v390 = vpop.f32.mrb[0].mxu0
        %391 = vmatprep.mubr.f32.mxu0 0.0
        %v392 = vand.u32 %v253, 4294901760
        %v393 = vsub.f32 %v253, %v392
        %v394 = vand.u32 %v393, 4294901760
        %v395 = vsub.f32 %v393, %v394
        %v396 = vand.u32 %v395, 4294901760
        %397 = vmatmul.mubr.f32.gmra.mrb[0].mxu0 %v396
        %v398 = vpop.f32.mrb[0].mxu0
        %v399 = vadd.f32 0.0, %v398
        %v400 = vpop.f32.mrb[0].mxu0
        %401 = vdwg.mxu0
        %402 = vmatprep.subr.mxu0 0.0
        %v403 = vand.u32 %v228, 4294901760
        %v404 = vsub.f32 %v228, %v403
        %v405 = vand.u32 %v404, 4294901760
        %v406 = vsub.f32 %v404, %v405
        %v407 = vand.u32 %v406, 4294901760
        %408 = vmatpush1.msra.mxu0 %v407
        %409 = vmatprep.subr.mxu0 0.0
        %v410 = vand.u32 %v229, 4294901760
        %v411 = vsub.f32 %v229, %v410
        %v412 = vand.u32 %v411, 4294901760
        %v413 = vsub.f32 %v411, %v412
        %v414 = vand.u32 %v413, 4294901760
        %415 = vmatpush1.msra.mxu0 %v414
        %416 = vmatprep.subr.mxu0 0.0
        %417 = vmatpush1.msra.mxu0 0.0
        %418 = vmatprep.subr.mxu0 0.0
        %419 = vmatpush1.msra.mxu0 0.0
        %420 = vmatprep.subr.mxu0 0.0
        %421 = vmatpush1.msra.mxu0 0.0
        %422 = vmatprep.subr.mxu0 0.0
        %423 = vmatpush1.msra.mxu0 0.0
        %424 = vmatprep.subr.mxu0 0.0
        %425 = vmatpush1.msra.mxu0 0.0
        %426 = vmatprep.subr.mxu0 0.0
        %427 = vmatpush1.msra.mxu0 0.0
        %428 = vmatprep.subr.mxu0 0.0
        %429 = vmatpush1.msra.mxu0 0.0
        %430 = vmatprep.subr.mxu0 0.0
        %431 = vmatpush1.msra.mxu0 0.0
        %432 = vmatprep.subr.mxu0 0.0
        %433 = vmatpush1.msra.mxu0 0.0
        %434 = vmatprep.subr.mxu0 0.0
        %435 = vmatpush1.msra.mxu0 0.0
        %436 = vmatprep.subr.mxu0 0.0
        %437 = vmatpush1.msra.mxu0 0.0
        %438 = vmatprep.subr.mxu0 0.0
        %439 = vmatpush1.msra.mxu0 0.0
        %440 = vmatprep.subr.mxu0 0.0
        %441 = vmatpush1.msra.mxu0 0.0
        %442 = vmatprep.subr.mxu0 0.0
        %443 = vmatpush1.msra.mxu0 0.0
        %444 = vmatprep.subr.mxu0 0.0
        %445 = vmatpush1.msra.mxu0 0.0
        %446 = vmatprep.subr.mxu0 0.0
        %447 = vmatpush1.msra.mxu0 0.0
        %448 = vmatprep.subr.mxu0 0.0
        %449 = vmatpush1.msra.mxu0 0.0
        %450 = vmatprep.subr.mxu0 0.0
        %451 = vmatpush1.msra.mxu0 0.0
        %452 = vmatprep.subr.mxu0 0.0
        %453 = vmatpush1.msra.mxu0 0.0
        %454 = vmatprep.subr.mxu0 0.0
        %455 = vmatpush1.msra.mxu0 0.0
        %456 = vmatprep.subr.mxu0 0.0
        %457 = vmatpush1.msra.mxu0 0.0
        %458 = vmatprep.subr.mxu0 0.0
        %459 = vmatpush1.msra.mxu0 0.0
        %460 = vmatprep.subr.mxu0 0.0
        %461 = vmatpush1.msra.mxu0 0.0
        %462 = vmatprep.subr.mxu0 0.0
        %463 = vmatpush1.msra.mxu0 0.0
        %464 = vmatprep.subr.mxu0 0.0
        %465 = vmatpush1.msra.mxu0 0.0
        %466 = vmatprep.subr.mxu0 0.0
        %467 = vmatpush1.msra.mxu0 0.0
        %468 = vmatprep.subr.mxu0 0.0
        %469 = vmatpush1.msra.mxu0 0.0
        %470 = vmatprep.subr.mxu0 0.0
        %471 = vmatpush1.msra.mxu0 0.0
        %472 = vmatprep.subr.mxu0 0.0
        %473 = vmatpush1.msra.mxu0 0.0
        %474 = vmatprep.subr.mxu0 0.0
        %475 = vmatpush1.msra.mxu0 0.0
        %476 = vmatprep.mubr.f32.mxu0 0.0
        %v477 = vand.u32 %v232, 4294901760
        %478 = vmatmul.mubr.f32.gmra.mrb[0].mxu0 %v477
        %v479 = vpop.f32.mrb[0].mxu0
        %v480 = vadd.f32 %v329, %v479
        %v481 = vpop.f32.mrb[0].mxu0
        %482 = vmatprep.mubr.f32.mxu0 0.0
        %v483 = vand.u32 %v235, 4294901760
        %484 = vmatmul.mubr.f32.gmra.mrb[0].mxu0 %v483
        %v485 = vpop.f32.mrb[0].mxu0
        %v486 = vadd.f32 %v339, %v485
        %v487 = vpop.f32.mrb[0].mxu0
        %488 = vmatprep.mubr.f32.mxu0 0.0
        %v489 = vand.u32 %v238, 4294901760
        %490 = vmatmul.mubr.f32.gmra.mrb[0].mxu0 %v489
        %v491 = vpop.f32.mrb[0].mxu0
        %v492 = vadd.f32 %v349, %v491
        %v493 = vpop.f32.mrb[0].mxu0
        %494 = vmatprep.mubr.f32.mxu0 0.0
        %v495 = vand.u32 %v241, 4294901760
        %496 = vmatmul.mubr.f32.gmra.mrb[0].mxu0 %v495
        %v497 = vpop.f32.mrb[0].mxu0
        %v498 = vadd.f32 %v359, %v497
        %v499 = vpop.f32.mrb[0].mxu0
        %500 = vmatprep.mubr.f32.mxu0 0.0
        %v501 = vand.u32 %v244, 4294901760
        %502 = vmatmul.mubr.f32.gmra.mrb[0].mxu0 %v501
        %v503 = vpop.f32.mrb[0].mxu0
        %v504 = vadd.f32 %v369, %v503
        %v505 = vpop.f32.mrb[0].mxu0
        %506 = vmatprep.mubr.f32.mxu0 0.0
        %v507 = vand.u32 %v247, 4294901760
        %508 = vmatmul.mubr.f32.gmra.mrb[0].mxu0 %v507
        %v509 = vpop.f32.mrb[0].mxu0
        %v510 = vadd.f32 %v379, %v509
        %v511 = vpop.f32.mrb[0].mxu0
        %512 = vmatprep.mubr.f32.mxu0 0.0
        %v513 = vand.u32 %v250, 4294901760
        %514 = vmatmul.mubr.f32.gmra.mrb[0].mxu0 %v513
        %v515 = vpop.f32.mrb[0].mxu0
        %v516 = vadd.f32 %v389, %v515
        %v517 = vpop.f32.mrb[0].mxu0
        %518 = vmatprep.mubr.f32.mxu0 0.0
        %v519 = vand.u32 %v253, 4294901760
        %520 = vmatmul.mubr.f32.gmra.mrb[0].mxu0 %v519
        %v521 = vpop.f32.mrb[0].mxu0
        %v522 = vadd.f32 %v399, %v521
        %v523 = vpop.f32.mrb[0].mxu0
        %524 = vdwg.mxu0
        %525 = vmatprep.subr.mxu0 0.0
        %v526 = vand.u32 %v228, 4294901760
        %v527 = vsub.f32 %v228, %v526
        %528 = vmatpush1.msra.mxu0 %v527
        %529 = vmatprep.subr.mxu0 0.0
        %v530 = vand.u32 %v229, 4294901760
        %v531 = vsub.f32 %v229, %v530
        %532 = vmatpush1.msra.mxu0 %v531
        %533 = vmatprep.subr.mxu0 0.0
        %534 = vmatpush1.msra.mxu0 0.0
        %535 = vmatprep.subr.mxu0 0.0
        %536 = vmatpush1.msra.mxu0 0.0
        %537 = vmatprep.subr.mxu0 0.0
        %538 = vmatpush1.msra.mxu0 0.0
        %539 = vmatprep.subr.mxu0 0.0
        %540 = vmatpush1.msra.mxu0 0.0
        %541 = vmatprep.subr.mxu0 0.0
        %542 = vmatpush1.msra.mxu0 0.0
        %543 = vmatprep.subr.mxu0 0.0
        %544 = vmatpush1.msra.mxu0 0.0
        %545 = vmatprep.subr.mxu0 0.0
        %546 = vmatpush1.msra.mxu0 0.0
        %547 = vmatprep.subr.mxu0 0.0
        %548 = vmatpush1.msra.mxu0 0.0
        %549 = vmatprep.subr.mxu0 0.0
        %550 = vmatpush1.msra.mxu0 0.0
        %551 = vmatprep.subr.mxu0 0.0
        %552 = vmatpush1.msra.mxu0 0.0
        %553 = vmatprep.subr.mxu0 0.0
        %554 = vmatpush1.msra.mxu0 0.0
        %555 = vmatprep.subr.mxu0 0.0
        %556 = vmatpush1.msra.mxu0 0.0
        %557 = vmatprep.subr.mxu0 0.0
        %558 = vmatpush1.msra.mxu0 0.0
        %559 = vmatprep.subr.mxu0 0.0
        %560 = vmatpush1.msra.mxu0 0.0
        %561 = vmatprep.subr.mxu0 0.0
        %562 = vmatpush1.msra.mxu0 0.0
        %563 = vmatprep.subr.mxu0 0.0
        %564 = vmatpush1.msra.mxu0 0.0
        %565 = vmatprep.subr.mxu0 0.0
        %566 = vmatpush1.msra.mxu0 0.0
        %567 = vmatprep.subr.mxu0 0.0
        %568 = vmatpush1.msra.mxu0 0.0
        %569 = vmatprep.subr.mxu0 0.0
        %570 = vmatpush1.msra.mxu0 0.0
        %571 = vmatprep.subr.mxu0 0.0
        %572 = vmatpush1.msra.mxu0 0.0
        %573 = vmatprep.subr.mxu0 0.0
        %574 = vmatpush1.msra.mxu0 0.0
        %575 = vmatprep.subr.mxu0 0.0
        %576 = vmatpush1.msra.mxu0 0.0
        %577 = vmatprep.subr.mxu0 0.0
        %578 = vmatpush1.msra.mxu0 0.0
        %579 = vmatprep.subr.mxu0 0.0
        %580 = vmatpush1.msra.mxu0 0.0
        %581 = vmatprep.subr.mxu0 0.0
        %582 = vmatpush1.msra.mxu0 0.0
        %583 = vmatprep.subr.mxu0 0.0
        %584 = vmatpush1.msra.mxu0 0.0
        %585 = vmatprep.subr.mxu0 0.0
        %586 = vmatpush1.msra.mxu0 0.0
        %587 = vmatprep.subr.mxu0 0.0
        %588 = vmatpush1.msra.mxu0 0.0
        %589 = vmatprep.subr.mxu0 0.0
        %590 = vmatpush1.msra.mxu0 0.0
        %591 = vmatprep.subr.mxu0 0.0
        %592 = vmatpush1.msra.mxu0 0.0
        %593 = vmatprep.mubr.f32.mxu0 0.0
        %v594 = vand.u32 %v232, 4294901760
        %v595 = vsub.f32 %v232, %v594
        %596 = vmatmul.mubr.f32.gmra.mrb[0].mxu0 %v595
        %v597 = vpop.f32.mrb[0].mxu0
        %v598 = vadd.f32 %v480, %v597
        %v599 = vpop.f32.mrb[0].mxu0
        %600 = vmatprep.mubr.f32.mxu0 0.0
        %v601 = vand.u32 %v235, 4294901760
        %v602 = vsub.f32 %v235, %v601
        %603 = vmatmul.mubr.f32.gmra.mrb[0].mxu0 %v602
        %v604 = vpop.f32.mrb[0].mxu0
        %v605 = vadd.f32 %v486, %v604
        %v606 = vpop.f32.mrb[0].mxu0
        %607 = vmatprep.mubr.f32.mxu0 0.0
        %v608 = vand.u32 %v238, 4294901760
        %v609 = vsub.f32 %v238, %v608
        %610 = vmatmul.mubr.f32.gmra.mrb[0].mxu0 %v609
        %v611 = vpop.f32.mrb[0].mxu0
        %v612 = vadd.f32 %v492, %v611
        %v613 = vpop.f32.mrb[0].mxu0
        %614 = vmatprep.mubr.f32.mxu0 0.0
        %v615 = vand.u32 %v241, 4294901760
        %v616 = vsub.f32 %v241, %v615
        %617 = vmatmul.mubr.f32.gmra.mrb[0].mxu0 %v616
        %v618 = vpop.f32.mrb[0].mxu0
        %v619 = vadd.f32 %v498, %v618
        %v620 = vpop.f32.mrb[0].mxu0
        %621 = vmatprep.mubr.f32.mxu0 0.0
        %v622 = vand.u32 %v244, 4294901760
        %v623 = vsub.f32 %v244, %v622
        %624 = vmatmul.mubr.f32.gmra.mrb[0].mxu0 %v623
        %v625 = vpop.f32.mrb[0].mxu0
        %v626 = vadd.f32 %v504, %v625
        %v627 = vpop.f32.mrb[0].mxu0
        %628 = vmatprep.mubr.f32.mxu0 0.0
        %v629 = vand.u32 %v247, 4294901760
        %v630 = vsub.f32 %v247, %v629
        %631 = vmatmul.mubr.f32.gmra.mrb[0].mxu0 %v630
        %v632 = vpop.f32.mrb[0].mxu0
        %v633 = vadd.f32 %v510, %v632
        %v634 = vpop.f32.mrb[0].mxu0
        %635 = vmatprep.mubr.f32.mxu0 0.0
        %v636 = vand.u32 %v250, 4294901760
        %v637 = vsub.f32 %v250, %v636
        %638 = vmatmul.mubr.f32.gmra.mrb[0].mxu0 %v637
        %v639 = vpop.f32.mrb[0].mxu0
        %v640 = vadd.f32 %v516, %v639
        %v641 = vpop.f32.mrb[0].mxu0
        %642 = vmatprep.mubr.f32.mxu0 0.0
        %v643 = vand.u32 %v253, 4294901760
        %v644 = vsub.f32 %v253, %v643
        %645 = vmatmul.mubr.f32.gmra.mrb[0].mxu0 %v644
        %v646 = vpop.f32.mrb[0].mxu0
        %v647 = vadd.f32 %v522, %v646
        %v648 = vpop.f32.mrb[0].mxu0
        %649 = vdwg.mxu0
        %650 = vmatprep.subr.mxu0 0.0
        %v651 = vand.u32 %v228, 4294901760
        %652 = vmatpush1.msra.mxu0 %v651
        %653 = vmatprep.subr.mxu0 0.0
        %v654 = vand.u32 %v229, 4294901760
        %655 = vmatpush1.msra.mxu0 %v654
        %656 = vmatprep.subr.mxu0 0.0
        %657 = vmatpush1.msra.mxu0 0.0
        %658 = vmatprep.subr.mxu0 0.0
        %659 = vmatpush1.msra.mxu0 0.0
        %660 = vmatprep.subr.mxu0 0.0
        %661 = vmatpush1.msra.mxu0 0.0
        %662 = vmatprep.subr.mxu0 0.0
        %663 = vmatpush1.msra.mxu0 0.0
        %664 = vmatprep.subr.mxu0 0.0
        %665 = vmatpush1.msra.mxu0 0.0
        %666 = vmatprep.subr.mxu0 0.0
        %667 = vmatpush1.msra.mxu0 0.0
        %668 = vmatprep.subr.mxu0 0.0
        %669 = vmatpush1.msra.mxu0 0.0
        %670 = vmatprep.subr.mxu0 0.0
        %671 = vmatpush1.msra.mxu0 0.0
        %672 = vmatprep.subr.mxu0 0.0
        %673 = vmatpush1.msra.mxu0 0.0
        %674 = vmatprep.subr.mxu0 0.0
        %675 = vmatpush1.msra.mxu0 0.0
        %676 = vmatprep.subr.mxu0 0.0
        %677 = vmatpush1.msra.mxu0 0.0
        %678 = vmatprep.subr.mxu0 0.0
        %679 = vmatpush1.msra.mxu0 0.0
        %680 = vmatprep.subr.mxu0 0.0
        %681 = vmatpush1.msra.mxu0 0.0
        %682 = vmatprep.subr.mxu0 0.0
        %683 = vmatpush1.msra.mxu0 0.0
        %684 = vmatprep.subr.mxu0 0.0
        %685 = vmatpush1.msra.mxu0 0.0
        %686 = vmatprep.subr.mxu0 0.0
        %687 = vmatpush1.msra.mxu0 0.0
        %688 = vmatprep.subr.mxu0 0.0
        %689 = vmatpush1.msra.mxu0 0.0
        %690 = vmatprep.subr.mxu0 0.0
        %691 = vmatpush1.msra.mxu0 0.0
        %692 = vmatprep.subr.mxu0 0.0
        %693 = vmatpush1.msra.mxu0 0.0
        %694 = vmatprep.subr.mxu0 0.0
        %695 = vmatpush1.msra.mxu0 0.0
        %696 = vmatprep.subr.mxu0 0.0
        %697 = vmatpush1.msra.mxu0 0.0
        %698 = vmatprep.subr.mxu0 0.0
        %699 = vmatpush1.msra.mxu0 0.0
        %700 = vmatprep.subr.mxu0 0.0
        %701 = vmatpush1.msra.mxu0 0.0
        %702 = vmatprep.subr.mxu0 0.0
        %703 = vmatpush1.msra.mxu0 0.0
        %704 = vmatprep.subr.mxu0 0.0
        %705 = vmatpush1.msra.mxu0 0.0
        %706 = vmatprep.subr.mxu0 0.0
        %707 = vmatpush1.msra.mxu0 0.0
        %708 = vmatprep.subr.mxu0 0.0
        %709 = vmatpush1.msra.mxu0 0.0
        %710 = vmatprep.subr.mxu0 0.0
        %711 = vmatpush1.msra.mxu0 0.0
        %712 = vmatprep.subr.mxu0 0.0
        %713 = vmatpush1.msra.mxu0 0.0
        %714 = vmatprep.subr.mxu0 0.0
        %715 = vmatpush1.msra.mxu0 0.0
        %716 = vmatprep.mubr.f32.mxu0 0.0
        %v717 = vand.u32 %v232, 4294901760
        %v718 = vsub.f32 %v232, %v717
        %v719 = vand.u32 %v718, 4294901760
        %720 = vmatmul.mubr.f32.gmra.mrb[0].mxu0 %v719
        %v721 = vpop.f32.mrb[0].mxu0
        %v722 = vadd.f32 %v598, %v721
        %v723 = vpop.f32.mrb[0].mxu0
        %724 = vmatprep.mubr.f32.mxu0 0.0
        %v725 = vand.u32 %v235, 4294901760
        %v726 = vsub.f32 %v235, %v725
        %v727 = vand.u32 %v726, 4294901760
        %728 = vmatmul.mubr.f32.gmra.mrb[0].mxu0 %v727
        %v729 = vpop.f32.mrb[0].mxu0
        %v730 = vadd.f32 %v605, %v729
        %v731 = vpop.f32.mrb[0].mxu0
        %732 = vmatprep.mubr.f32.mxu0 0.0
        %v733 = vand.u32 %v238, 4294901760
        %v734 = vsub.f32 %v238, %v733
        %v735 = vand.u32 %v734, 4294901760
        %736 = vmatmul.mubr.f32.gmra.mrb[0].mxu0 %v735
        %v737 = vpop.f32.mrb[0].mxu0
        %v738 = vadd.f32 %v612, %v737
        %v739 = vpop.f32.mrb[0].mxu0
        %740 = vmatprep.mubr.f32.mxu0 0.0
        %v741 = vand.u32 %v241, 4294901760
        %v742 = vsub.f32 %v241, %v741
        %v743 = vand.u32 %v742, 4294901760
        %744 = vmatmul.mubr.f32.gmra.mrb[0].mxu0 %v743
        %v745 = vpop.f32.mrb[0].mxu0
        %v746 = vadd.f32 %v619, %v745
        %v747 = vpop.f32.mrb[0].mxu0
        %748 = vmatprep.mubr.f32.mxu0 0.0
        %v749 = vand.u32 %v244, 4294901760
        %v750 = vsub.f32 %v244, %v749
        %v751 = vand.u32 %v750, 4294901760
        %752 = vmatmul.mubr.f32.gmra.mrb[0].mxu0 %v751
        %v753 = vpop.f32.mrb[0].mxu0
        %v754 = vadd.f32 %v626, %v753
        %v755 = vpop.f32.mrb[0].mxu0
        %756 = vmatprep.mubr.f32.mxu0 0.0
        %v757 = vand.u32 %v247, 4294901760
        %v758 = vsub.f32 %v247, %v757
        %v759 = vand.u32 %v758, 4294901760
        %760 = vmatmul.mubr.f32.gmra.mrb[0].mxu0 %v759
        %v761 = vpop.f32.mrb[0].mxu0
        %v762 = vadd.f32 %v633, %v761
        %v763 = vpop.f32.mrb[0].mxu0
        %764 = vmatprep.mubr.f32.mxu0 0.0
        %v765 = vand.u32 %v250, 4294901760
        %v766 = vsub.f32 %v250, %v765
        %v767 = vand.u32 %v766, 4294901760
        %768 = vmatmul.mubr.f32.gmra.mrb[0].mxu0 %v767
        %v769 = vpop.f32.mrb[0].mxu0
        %v770 = vadd.f32 %v640, %v769
        %v771 = vpop.f32.mrb[0].mxu0
        %772 = vmatprep.mubr.f32.mxu0 0.0
        %v773 = vand.u32 %v253, 4294901760
        %v774 = vsub.f32 %v253, %v773
        %v775 = vand.u32 %v774, 4294901760
        %776 = vmatmul.mubr.f32.gmra.mrb[0].mxu0 %v775
        %v777 = vpop.f32.mrb[0].mxu0
        %v778 = vadd.f32 %v647, %v777
        %v779 = vpop.f32.mrb[0].mxu0
        %780 = vdwg.mxu0
        %781 = vmatprep.subr.mxu0 0.0
        %v782 = vand.u32 %v228, 4294901760
        %v783 = vsub.f32 %v228, %v782
        %v784 = vand.u32 %v783, 4294901760
        %785 = vmatpush1.msra.mxu0 %v784
        %786 = vmatprep.subr.mxu0 0.0
        %v787 = vand.u32 %v229, 4294901760
        %v788 = vsub.f32 %v229, %v787
        %v789 = vand.u32 %v788, 4294901760
        %790 = vmatpush1.msra.mxu0 %v789
        %791 = vmatprep.subr.mxu0 0.0
        %792 = vmatpush1.msra.mxu0 0.0
        %793 = vmatprep.subr.mxu0 0.0
        %794 = vmatpush1.msra.mxu0 0.0
        %795 = vmatprep.subr.mxu0 0.0
        %796 = vmatpush1.msra.mxu0 0.0
        %797 = vmatprep.subr.mxu0 0.0
        %798 = vmatpush1.msra.mxu0 0.0
        %799 = vmatprep.subr.mxu0 0.0
        %800 = vmatpush1.msra.mxu0 0.0
        %801 = vmatprep.subr.mxu0 0.0
        %802 = vmatpush1.msra.mxu0 0.0
        %803 = vmatprep.subr.mxu0 0.0
        %804 = vmatpush1.msra.mxu0 0.0
        %805 = vmatprep.subr.mxu0 0.0
        %806 = vmatpush1.msra.mxu0 0.0
        %807 = vmatprep.subr.mxu0 0.0
        %808 = vmatpush1.msra.mxu0 0.0
        %809 = vmatprep.subr.mxu0 0.0
        %810 = vmatpush1.msra.mxu0 0.0
        %811 = vmatprep.subr.mxu0 0.0
        %812 = vmatpush1.msra.mxu0 0.0
        %813 = vmatprep.subr.mxu0 0.0
        %814 = vmatpush1.msra.mxu0 0.0
        %815 = vmatprep.subr.mxu0 0.0
        %816 = vmatpush1.msra.mxu0 0.0
        %817 = vmatprep.subr.mxu0 0.0
        %818 = vmatpush1.msra.mxu0 0.0
        %819 = vmatprep.subr.mxu0 0.0
        %820 = vmatpush1.msra.mxu0 0.0
        %821 = vmatprep.subr.mxu0 0.0
        %822 = vmatpush1.msra.mxu0 0.0
        %823 = vmatprep.subr.mxu0 0.0
        %824 = vmatpush1.msra.mxu0 0.0
        %825 = vmatprep.subr.mxu0 0.0
        %826 = vmatpush1.msra.mxu0 0.0
        %827 = vmatprep.subr.mxu0 0.0
        %828 = vmatpush1.msra.mxu0 0.0
        %829 = vmatprep.subr.mxu0 0.0
        %830 = vmatpush1.msra.mxu0 0.0
        %831 = vmatprep.subr.mxu0 0.0
        %832 = vmatpush1.msra.mxu0 0.0
        %833 = vmatprep.subr.mxu0 0.0
        %834 = vmatpush1.msra.mxu0 0.0
        %835 = vmatprep.subr.mxu0 0.0
        %836 = vmatpush1.msra.mxu0 0.0
        %837 = vmatprep.subr.mxu0 0.0
        %838 = vmatpush1.msra.mxu0 0.0
        %839 = vmatprep.subr.mxu0 0.0
        %840 = vmatpush1.msra.mxu0 0.0
        %841 = vmatprep.subr.mxu0 0.0
        %842 = vmatpush1.msra.mxu0 0.0
        %843 = vmatprep.subr.mxu0 0.0
        %844 = vmatpush1.msra.mxu0 0.0
        %845 = vmatprep.subr.mxu0 0.0
        %846 = vmatpush1.msra.mxu0 0.0
        %847 = vmatprep.subr.mxu0 0.0
        %848 = vmatpush1.msra.mxu0 0.0
        %849 = vmatprep.subr.mxu0 0.0
        %850 = vmatpush1.msra.mxu0 0.0
        %851 = vmatprep.mubr.f32.mxu0 0.0
        %v852 = vand.u32 %v232, 4294901760
        %853 = vmatmul.mubr.f32.gmra.mrb[0].mxu0 %v852
        %v854 = vpop.f32.mrb[0].mxu0
        %v855 = vadd.f32 %v722, %v854
        %v856 = vpop.f32.mrb[0].mxu0
        %857 = vmatprep.mubr.f32.mxu0 0.0
        %v858 = vand.u32 %v235, 4294901760
        %859 = vmatmul.mubr.f32.gmra.mrb[0].mxu0 %v858
        %v860 = vpop.f32.mrb[0].mxu0
        %v861 = vadd.f32 %v730, %v860
        %v862 = vpop.f32.mrb[0].mxu0
        %863 = vmatprep.mubr.f32.mxu0 0.0
        %v864 = vand.u32 %v238, 4294901760
        %865 = vmatmul.mubr.f32.gmra.mrb[0].mxu0 %v864
        %v866 = vpop.f32.mrb[0].mxu0
        %v867 = vadd.f32 %v738, %v866
        %v868 = vpop.f32.mrb[0].mxu0
        %869 = vmatprep.mubr.f32.mxu0 0.0
        %v870 = vand.u32 %v241, 4294901760
        %871 = vmatmul.mubr.f32.gmra.mrb[0].mxu0 %v870
        %v872 = vpop.f32.mrb[0].mxu0
        %v873 = vadd.f32 %v746, %v872
        %v874 = vpop.f32.mrb[0].mxu0
        %875 = vmatprep.mubr.f32.mxu0 0.0
        %v876 = vand.u32 %v244, 4294901760
        %877 = vmatmul.mubr.f32.gmra.mrb[0].mxu0 %v876
        %v878 = vpop.f32.mrb[0].mxu0
        %v879 = vadd.f32 %v754, %v878
        %v880 = vpop.f32.mrb[0].mxu0
        %881 = vmatprep.mubr.f32.mxu0 0.0
        %v882 = vand.u32 %v247, 4294901760
        %883 = vmatmul.mubr.f32.gmra.mrb[0].mxu0 %v882
        %v884 = vpop.f32.mrb[0].mxu0
        %v885 = vadd.f32 %v762, %v884
        %v886 = vpop.f32.mrb[0].mxu0
        %887 = vmatprep.mubr.f32.mxu0 0.0
        %v888 = vand.u32 %v250, 4294901760
        %889 = vmatmul.mubr.f32.gmra.mrb[0].mxu0 %v888
        %v890 = vpop.f32.mrb[0].mxu0
        %v891 = vadd.f32 %v770, %v890
        %v892 = vpop.f32.mrb[0].mxu0
        %893 = vmatprep.mubr.f32.mxu0 0.0
        %v894 = vand.u32 %v253, 4294901760
        %895 = vmatmul.mubr.f32.gmra.mrb[0].mxu0 %v894
        %v896 = vpop.f32.mrb[0].mxu0
        %v897 = vadd.f32 %v778, %v896
        %v898 = vpop.f32.mrb[0].mxu0
        %899 = vdwg.mxu0
        %900 = vmatprep.subr.mxu0 0.0
        %v901 = vand.u32 %v228, 4294901760
        %902 = vmatpush1.msra.mxu0 %v901
        %903 = vmatprep.subr.mxu0 0.0
        %v904 = vand.u32 %v229, 4294901760
        %905 = vmatpush1.msra.mxu0 %v904
        %906 = vmatprep.subr.mxu0 0.0
        %907 = vmatpush1.msra.mxu0 0.0
        %908 = vmatprep.subr.mxu0 0.0
        %909 = vmatpush1.msra.mxu0 0.0
        %910 = vmatprep.subr.mxu0 0.0
        %911 = vmatpush1.msra.mxu0 0.0
        %912 = vmatprep.subr.mxu0 0.0
        %913 = vmatpush1.msra.mxu0 0.0
        %914 = vmatprep.subr.mxu0 0.0
        %915 = vmatpush1.msra.mxu0 0.0
        %916 = vmatprep.subr.mxu0 0.0
        %917 = vmatpush1.msra.mxu0 0.0
        %918 = vmatprep.subr.mxu0 0.0
        %919 = vmatpush1.msra.mxu0 0.0
        %920 = vmatprep.subr.mxu0 0.0
        %921 = vmatpush1.msra.mxu0 0.0
        %922 = vmatprep.subr.mxu0 0.0
        %923 = vmatpush1.msra.mxu0 0.0
        %924 = vmatprep.subr.mxu0 0.0
        %925 = vmatpush1.msra.mxu0 0.0
        %926 = vmatprep.subr.mxu0 0.0
        %927 = vmatpush1.msra.mxu0 0.0
        %928 = vmatprep.subr.mxu0 0.0
        %929 = vmatpush1.msra.mxu0 0.0
        %930 = vmatprep.subr.mxu0 0.0
        %931 = vmatpush1.msra.mxu0 0.0
        %932 = vmatprep.subr.mxu0 0.0
        %933 = vmatpush1.msra.mxu0 0.0
        %934 = vmatprep.subr.mxu0 0.0
        %935 = vmatpush1.msra.mxu0 0.0
        %936 = vmatprep.subr.mxu0 0.0
        %937 = vmatpush1.msra.mxu0 0.0
        %938 = vmatprep.subr.mxu0 0.0
        %939 = vmatpush1.msra.mxu0 0.0
        %940 = vmatprep.subr.mxu0 0.0
        %941 = vmatpush1.msra.mxu0 0.0
        %942 = vmatprep.subr.mxu0 0.0
        %943 = vmatpush1.msra.mxu0 0.0
        %944 = vmatprep.subr.mxu0 0.0
        %945 = vmatpush1.msra.mxu0 0.0
        %946 = vmatprep.subr.mxu0 0.0
        %947 = vmatpush1.msra.mxu0 0.0
        %948 = vmatprep.subr.mxu0 0.0
        %949 = vmatpush1.msra.mxu0 0.0
        %950 = vmatprep.subr.mxu0 0.0
        %951 = vmatpush1.msra.mxu0 0.0
        %952 = vmatprep.subr.mxu0 0.0
        %953 = vmatpush1.msra.mxu0 0.0
        %954 = vmatprep.subr.mxu0 0.0
        %955 = vmatpush1.msra.mxu0 0.0
        %956 = vmatprep.subr.mxu0 0.0
        %957 = vmatpush1.msra.mxu0 0.0
        %958 = vmatprep.subr.mxu0 0.0
        %959 = vmatpush1.msra.mxu0 0.0
        %960 = vmatprep.subr.mxu0 0.0
        %961 = vmatpush1.msra.mxu0 0.0
        %962 = vmatprep.subr.mxu0 0.0
        %963 = vmatpush1.msra.mxu0 0.0
        %964 = vmatprep.subr.mxu0 0.0
        %965 = vmatpush1.msra.mxu0 0.0
        %966 = vmatprep.mubr.f32.mxu0 0.0
        %v967 = vand.u32 %v232, 4294901760
        %968 = vmatmul.mubr.f32.gmra.mrb[0].mxu0 %v967
        %v969 = vpop.f32.mrb[0].mxu0
        %v970 = vadd.f32 %v855, %v969
        %v971 = vpop.f32.mrb[0].mxu0
        %972 = vmatprep.mubr.f32.mxu0 0.0
        %v973 = vand.u32 %v235, 4294901760
        %974 = vmatmul.mubr.f32.gmra.mrb[0].mxu0 %v973
        %v975 = vpop.f32.mrb[0].mxu0
        %v976 = vadd.f32 %v861, %v975
        %v977 = vpop.f32.mrb[0].mxu0
        %978 = vmatprep.mubr.f32.mxu0 0.0
        %v979 = vand.u32 %v238, 4294901760
        %980 = vmatmul.mubr.f32.gmra.mrb[0].mxu0 %v979
        %v981 = vpop.f32.mrb[0].mxu0
        %v982 = vadd.f32 %v867, %v981
        %v983 = vpop.f32.mrb[0].mxu0
        %984 = vmatprep.mubr.f32.mxu0 0.0
        %v985 = vand.u32 %v241, 4294901760
        %986 = vmatmul.mubr.f32.gmra.mrb[0].mxu0 %v985
        %v987 = vpop.f32.mrb[0].mxu0
        %v988 = vadd.f32 %v873, %v987
        %v989 = vpop.f32.mrb[0].mxu0
        %990 = vmatprep.mubr.f32.mxu0 0.0
        %v991 = vand.u32 %v244, 4294901760
        %992 = vmatmul.mubr.f32.gmra.mrb[0].mxu0 %v991
        %v993 = vpop.f32.mrb[0].mxu0
        %v994 = vadd.f32 %v879, %v993
        %v995 = vpop.f32.mrb[0].mxu0
        %996 = vmatprep.mubr.f32.mxu0 0.0
        %v997 = vand.u32 %v247, 4294901760
        %998 = vmatmul.mubr.f32.gmra.mrb[0].mxu0 %v997
        %v999 = vpop.f32.mrb[0].mxu0
        %v1000 = vadd.f32 %v885, %v999
        %v1001 = vpop.f32.mrb[0].mxu0
        %1002 = vmatprep.mubr.f32.mxu0 0.0
        %v1003 = vand.u32 %v250, 4294901760
        %1004 = vmatmul.mubr.f32.gmra.mrb[0].mxu0 %v1003
        %v1005 = vpop.f32.mrb[0].mxu0
        %v1006 = vadd.f32 %v891, %v1005
        %v1007 = vpop.f32.mrb[0].mxu0
        %1008 = vmatprep.mubr.f32.mxu0 0.0
        %v1009 = vand.u32 %v253, 4294901760
        %1010 = vmatmul.mubr.f32.gmra.mrb[0].mxu0 %v1009
        %v1011 = vpop.f32.mrb[0].mxu0
        %v1012 = vadd.f32 %v897, %v1011
        %v1013 = vpop.f32.mrb[0].mxu0
        %1014 = vdwg.mxu0
        %1015 = vxpose.xlu0.b32.start [1/16] %v970, 128
        %1016 = vxpose.xlu0.b32.cont [2/16] %v976, 128
        %1017 = vxpose.xlu0.b32.cont [3/16] 0.0, 128
        %1018 = vxpose.xlu0.b32.cont [4/16] 0.0, 128
        %1019 = vxpose.xlu0.b32.cont [5/16] 0.0, 128
        %1020 = vxpose.xlu0.b32.cont [6/16] 0.0, 128
        %1021 = vxpose.xlu0.b32.cont [7/16] 0.0, 128
        %1022 = vxpose.xlu0.b32.cont [8/16] 0.0, 128
        %1023 = vxpose.xlu0.b32.cont [9/16] 0.0, 128
        %1024 = vxpose.xlu0.b32.cont [10/16] 0.0, 128
        %1025 = vxpose.xlu0.b32.cont [11/16] 0.0, 128
        %1026 = vxpose.xlu0.b32.cont [12/16] 0.0, 128
        %1027 = vxpose.xlu0.b32.cont [13/16] 0.0, 128
        %1028 = vxpose.xlu0.b32.cont [14/16] 0.0, 128
        %1029 = vxpose.xlu0.b32.cont [15/16] 0.0, 128
        %1030 = vxpose.xlu0.b32.end [16/16] 0.0, 128
        %v1031 = vpop.trf.xlu0
        %v1032 = vpop.trf.xlu0
        %v1033 = vpop.trf.xlu0
        %v1034 = vpop.trf.xlu0
        %v1035 = vpop.trf.xlu0
        %v1036 = vpop.trf.xlu0
        %v1037 = vpop.trf.xlu0
        %v1038 = vpop.trf.xlu0
        %v1039 = vpop.trf.xlu0
        %v1040 = vpop.trf.xlu0
        %v1041 = vpop.trf.xlu0
        %v1042 = vpop.trf.xlu0
        %v1043 = vpop.trf.xlu0
        %v1044 = vpop.trf.xlu0
        %v1045 = vpop.trf.xlu0
        %v1046 = vpop.trf.xlu0
        %1047 = vxpose.xlu0.b32.start [1/16] %v982, 128
        %1048 = vxpose.xlu0.b32.cont [2/16] %v988, 128
        %1049 = vxpose.xlu0.b32.cont [3/16] 0.0, 128
        %1050 = vxpose.xlu0.b32.cont [4/16] 0.0, 128
        %1051 = vxpose.xlu0.b32.cont [5/16] 0.0, 128
        %1052 = vxpose.xlu0.b32.cont [6/16] 0.0, 128
        %1053 = vxpose.xlu0.b32.cont [7/16] 0.0, 128
        %1054 = vxpose.xlu0.b32.cont [8/16] 0.0, 128
        %1055 = vxpose.xlu0.b32.cont [9/16] 0.0, 128
        %1056 = vxpose.xlu0.b32.cont [10/16] 0.0, 128
        %1057 = vxpose.xlu0.b32.cont [11/16] 0.0, 128
        %1058 = vxpose.xlu0.b32.cont [12/16] 0.0, 128
        %1059 = vxpose.xlu0.b32.cont [13/16] 0.0, 128
        %1060 = vxpose.xlu0.b32.cont [14/16] 0.0, 128
        %1061 = vxpose.xlu0.b32.cont [15/16] 0.0, 128
        %1062 = vxpose.xlu0.b32.end [16/16] 0.0, 128
        %v1063 = vpop.trf.xlu0
        %v1064 = vpop.trf.xlu0
        %v1065 = vpop.trf.xlu0
        %v1066 = vpop.trf.xlu0
        %v1067 = vpop.trf.xlu0
        %v1068 = vpop.trf.xlu0
        %v1069 = vpop.trf.xlu0
        %v1070 = vpop.trf.xlu0
        %v1071 = vpop.trf.xlu0
        %v1072 = vpop.trf.xlu0
        %v1073 = vpop.trf.xlu0
        %v1074 = vpop.trf.xlu0
        %v1075 = vpop.trf.xlu0
        %v1076 = vpop.trf.xlu0
        %v1077 = vpop.trf.xlu0
        %v1078 = vpop.trf.xlu0
        %1079 = vxpose.xlu0.b32.start [1/16] %v994, 128
        %1080 = vxpose.xlu0.b32.cont [2/16] %v1000, 128
        %1081 = vxpose.xlu0.b32.cont [3/16] 0.0, 128
        %1082 = vxpose.xlu0.b32.cont [4/16] 0.0, 128
        %1083 = vxpose.xlu0.b32.cont [5/16] 0.0, 128
        %1084 = vxpose.xlu0.b32.cont [6/16] 0.0, 128
        %1085 = vxpose.xlu0.b32.cont [7/16] 0.0, 128
        %1086 = vxpose.xlu0.b32.cont [8/16] 0.0, 128
        %1087 = vxpose.xlu0.b32.cont [9/16] 0.0, 128
        %1088 = vxpose.xlu0.b32.cont [10/16] 0.0, 128
        %1089 = vxpose.xlu0.b32.cont [11/16] 0.0, 128
        %1090 = vxpose.xlu0.b32.cont [12/16] 0.0, 128
        %1091 = vxpose.xlu0.b32.cont [13/16] 0.0, 128
        %1092 = vxpose.xlu0.b32.cont [14/16] 0.0, 128
        %1093 = vxpose.xlu0.b32.cont [15/16] 0.0, 128
        %1094 = vxpose.xlu0.b32.end [16/16] 0.0, 128
        %v1095 = vpop.trf.xlu0
        %v1096 = vpop.trf.xlu0
        %v1097 = vpop.trf.xlu0
        %v1098 = vpop.trf.xlu0
        %v1099 = vpop.trf.xlu0
        %v1100 = vpop.trf.xlu0
        %v1101 = vpop.trf.xlu0
        %v1102 = vpop.trf.xlu0
        %v1103 = vpop.trf.xlu0
        %v1104 = vpop.trf.xlu0
        %v1105 = vpop.trf.xlu0
        %v1106 = vpop.trf.xlu0
        %v1107 = vpop.trf.xlu0
        %v1108 = vpop.trf.xlu0
        %v1109 = vpop.trf.xlu0
        %v1110 = vpop.trf.xlu0
        %1111 = vxpose.xlu0.b32.start [1/16] %v1006, 128
        %1112 = vxpose.xlu0.b32.cont [2/16] %v1012, 128
        %1113 = vxpose.xlu0.b32.cont [3/16] 0.0, 128
        %1114 = vxpose.xlu0.b32.cont [4/16] 0.0, 128
        %1115 = vxpose.xlu0.b32.cont [5/16] 0.0, 128
        %1116 = vxpose.xlu0.b32.cont [6/16] 0.0, 128
        %1117 = vxpose.xlu0.b32.cont [7/16] 0.0, 128
        %1118 = vxpose.xlu0.b32.cont [8/16] 0.0, 128
        %1119 = vxpose.xlu0.b32.cont [9/16] 0.0, 128
        %1120 = vxpose.xlu0.b32.cont [10/16] 0.0, 128
        %1121 = vxpose.xlu0.b32.cont [11/16] 0.0, 128
        %1122 = vxpose.xlu0.b32.cont [12/16] 0.0, 128
        %1123 = vxpose.xlu0.b32.cont [13/16] 0.0, 128
        %1124 = vxpose.xlu0.b32.cont [14/16] 0.0, 128
        %1125 = vxpose.xlu0.b32.cont [15/16] 0.0, 128
        %1126 = vxpose.xlu0.b32.end [16/16] 0.0, 128
        %v1127 = vpop.trf.xlu0
        %v1128 = vpop.trf.xlu0
        %v1129 = vpop.trf.xlu0
        %v1130 = vpop.trf.xlu0
        %v1131 = vpop.trf.xlu0
        %v1132 = vpop.trf.xlu0
        %v1133 = vpop.trf.xlu0
        %v1134 = vpop.trf.xlu0
        %v1135 = vpop.trf.xlu0
        %v1136 = vpop.trf.xlu0
        %v1137 = vpop.trf.xlu0
        %v1138 = vpop.trf.xlu0
        %v1139 = vpop.trf.xlu0
        %v1140 = vpop.trf.xlu0
        %v1141 = vpop.trf.xlu0
        %v1142 = vpop.trf.xlu0
        %v1144 = vsel %vm230, %v1031, 0
        %v1147 = vsel %vm230, %v1032, 0
        %v1150 = vsel %vm230, %v1033, 0
        %v1153 = vsel %vm230, %v1034, 0
        %v1156 = vsel %vm230, %v1063, 0
        %v1159 = vsel %vm230, %v1064, 0
        %v1162 = vsel %vm230, %v1065, 0
        %v1165 = vsel %vm230, %v1066, 0
        %v1168 = vsel %vm230, %v1095, 0
        %v1171 = vsel %vm230, %v1096, 0
        %v1174 = vsel %vm230, %v1097, 0
        %v1177 = vsel %vm230, %v1098, 0
        %v1180 = vsel %vm230, %v1127, 0
        %v1183 = vsel %vm230, %v1128, 0
        %v1186 = vsel %vm230, %v1129, 0
        %v1189 = vsel %vm230, %v1130, 0
        %1191 = vmatprep.subr.mxu0 0.0
        %v1192 = vand.u32 %v226, 4294901760
        %1193 = vmatpush1.msra.mxu0 %v1192
        %1194 = vmatprep.subr.mxu0 0.0
        %v1195 = vand.u32 %v227, 4294901760
        %1196 = vmatpush1.msra.mxu0 %v1195
        %1197 = vmatprep.subr.mxu0 0.0
        %1198 = vmatpush1.msra.mxu0 0.0
        %1199 = vmatprep.subr.mxu0 0.0
        %1200 = vmatpush1.msra.mxu0 0.0
        %1201 = vmatprep.subr.mxu0 0.0
        %1202 = vmatpush1.msra.mxu0 0.0
        %1203 = vmatprep.subr.mxu0 0.0
        %1204 = vmatpush1.msra.mxu0 0.0
        %1205 = vmatprep.subr.mxu0 0.0
        %1206 = vmatpush1.msra.mxu0 0.0
        %1207 = vmatprep.subr.mxu0 0.0
        %1208 = vmatpush1.msra.mxu0 0.0
        %1209 = vmatprep.subr.mxu0 0.0
        %1210 = vmatpush1.msra.mxu0 0.0
        %1211 = vmatprep.subr.mxu0 0.0
        %1212 = vmatpush1.msra.mxu0 0.0
        %1213 = vmatprep.subr.mxu0 0.0
        %1214 = vmatpush1.msra.mxu0 0.0
        %1215 = vmatprep.subr.mxu0 0.0
        %1216 = vmatpush1.msra.mxu0 0.0
        %1217 = vmatprep.subr.mxu0 0.0
        %1218 = vmatpush1.msra.mxu0 0.0
        %1219 = vmatprep.subr.mxu0 0.0
        %1220 = vmatpush1.msra.mxu0 0.0
        %1221 = vmatprep.subr.mxu0 0.0
        %1222 = vmatpush1.msra.mxu0 0.0
        %1223 = vmatprep.subr.mxu0 0.0
        %1224 = vmatpush1.msra.mxu0 0.0
        %1225 = vmatprep.subr.mxu0 0.0
        %1226 = vmatpush1.msra.mxu0 0.0
        %1227 = vmatprep.subr.mxu0 0.0
        %1228 = vmatpush1.msra.mxu0 0.0
        %1229 = vmatprep.subr.mxu0 0.0
        %1230 = vmatpush1.msra.mxu0 0.0
        %1231 = vmatprep.subr.mxu0 0.0
        %1232 = vmatpush1.msra.mxu0 0.0
        %1233 = vmatprep.subr.mxu0 0.0
        %1234 = vmatpush1.msra.mxu0 0.0
        %1235 = vmatprep.subr.mxu0 0.0
        %1236 = vmatpush1.msra.mxu0 0.0
        %1237 = vmatprep.subr.mxu0 0.0
        %1238 = vmatpush1.msra.mxu0 0.0
        %1239 = vmatprep.subr.mxu0 0.0
        %1240 = vmatpush1.msra.mxu0 0.0
        %1241 = vmatprep.subr.mxu0 0.0
        %1242 = vmatpush1.msra.mxu0 0.0
        %1243 = vmatprep.subr.mxu0 0.0
        %1244 = vmatpush1.msra.mxu0 0.0
        %1245 = vmatprep.subr.mxu0 0.0
        %1246 = vmatpush1.msra.mxu0 0.0
        %1247 = vmatprep.subr.mxu0 0.0
        %1248 = vmatpush1.msra.mxu0 0.0
        %1249 = vmatprep.subr.mxu0 0.0
        %1250 = vmatpush1.msra.mxu0 0.0
        %1251 = vmatprep.subr.mxu0 0.0
        %1252 = vmatpush1.msra.mxu0 0.0
        %1253 = vmatprep.subr.mxu0 0.0
        %1254 = vmatpush1.msra.mxu0 0.0
        %1255 = vmatprep.subr.mxu0 0.0
        %1256 = vmatpush1.msra.mxu0 0.0
        %1257 = vmatprep.mubr.f32.mxu0 0.0
        %v1258 = vand.u32 %v1144, 4294901760
        %v1259 = vsub.f32 %v1144, %v1258
        %v1260 = vand.u32 %v1259, 4294901760
        %v1261 = vsub.f32 %v1259, %v1260
        %v1262 = vand.u32 %v1261, 4294901760
        %1263 = vmatmul.mubr.f32.gmra.mrb[0].mxu0 %v1262
        %v1264 = vpop.f32.mrb[0].mxu0
        %v1265 = vadd.f32 0.0, %v1264
        %v1266 = vpop.f32.mrb[0].mxu0
        %1267 = vmatprep.mubr.f32.mxu0 0.0
        %v1268 = vand.u32 %v1147, 4294901760
        %v1269 = vsub.f32 %v1147, %v1268
        %v1270 = vand.u32 %v1269, 4294901760
        %v1271 = vsub.f32 %v1269, %v1270
        %v1272 = vand.u32 %v1271, 4294901760
        %1273 = vmatmul.mubr.f32.gmra.mrb[0].mxu0 %v1272
        %v1274 = vpop.f32.mrb[0].mxu0
        %v1275 = vadd.f32 0.0, %v1274
        %v1276 = vpop.f32.mrb[0].mxu0
        %1277 = vmatprep.mubr.f32.mxu0 0.0
        %v1278 = vand.u32 %v1150, 4294901760
        %v1279 = vsub.f32 %v1150, %v1278
        %v1280 = vand.u32 %v1279, 4294901760
        %v1281 = vsub.f32 %v1279, %v1280
        %v1282 = vand.u32 %v1281, 4294901760
        %1283 = vmatmul.mubr.f32.gmra.mrb[0].mxu0 %v1282
        %v1284 = vpop.f32.mrb[0].mxu0
        %v1285 = vadd.f32 0.0, %v1284
        %v1286 = vpop.f32.mrb[0].mxu0
        %1287 = vmatprep.mubr.f32.mxu0 0.0
        %v1288 = vand.u32 %v1153, 4294901760
        %v1289 = vsub.f32 %v1153, %v1288
        %v1290 = vand.u32 %v1289, 4294901760
        %v1291 = vsub.f32 %v1289, %v1290
        %v1292 = vand.u32 %v1291, 4294901760
        %1293 = vmatmul.mubr.f32.gmra.mrb[0].mxu0 %v1292
        %v1294 = vpop.f32.mrb[0].mxu0
        %v1295 = vadd.f32 0.0, %v1294
        %v1296 = vpop.f32.mrb[0].mxu0
        %1297 = vmatprep.mubr.f32.mxu0 0.0
        %v1298 = vand.u32 %v1156, 4294901760
        %v1299 = vsub.f32 %v1156, %v1298
        %v1300 = vand.u32 %v1299, 4294901760
        %v1301 = vsub.f32 %v1299, %v1300
        %v1302 = vand.u32 %v1301, 4294901760
        %1303 = vmatmul.mubr.f32.gmra.mrb[0].mxu0 %v1302
        %v1304 = vpop.f32.mrb[0].mxu0
        %v1305 = vadd.f32 0.0, %v1304
        %v1306 = vpop.f32.mrb[0].mxu0
        %1307 = vmatprep.mubr.f32.mxu0 0.0
        %v1308 = vand.u32 %v1159, 4294901760
        %v1309 = vsub.f32 %v1159, %v1308
        %v1310 = vand.u32 %v1309, 4294901760
        %v1311 = vsub.f32 %v1309, %v1310
        %v1312 = vand.u32 %v1311, 4294901760
        %1313 = vmatmul.mubr.f32.gmra.mrb[0].mxu0 %v1312
        %v1314 = vpop.f32.mrb[0].mxu0
        %v1315 = vadd.f32 0.0, %v1314
        %v1316 = vpop.f32.mrb[0].mxu0
        %1317 = vmatprep.mubr.f32.mxu0 0.0
        %v1318 = vand.u32 %v1162, 4294901760
        %v1319 = vsub.f32 %v1162, %v1318
        %v1320 = vand.u32 %v1319, 4294901760
        %v1321 = vsub.f32 %v1319, %v1320
        %v1322 = vand.u32 %v1321, 4294901760
        %1323 = vmatmul.mubr.f32.gmra.mrb[0].mxu0 %v1322
        %v1324 = vpop.f32.mrb[0].mxu0
        %v1325 = vadd.f32 0.0, %v1324
        %v1326 = vpop.f32.mrb[0].mxu0
        %1327 = vmatprep.mubr.f32.mxu0 0.0
        %v1328 = vand.u32 %v1165, 4294901760
        %v1329 = vsub.f32 %v1165, %v1328
        %v1330 = vand.u32 %v1329, 4294901760
        %v1331 = vsub.f32 %v1329, %v1330
        %v1332 = vand.u32 %v1331, 4294901760
        %1333 = vmatmul.mubr.f32.gmra.mrb[0].mxu0 %v1332
        %v1334 = vpop.f32.mrb[0].mxu0
        %v1335 = vadd.f32 0.0, %v1334
        %v1336 = vpop.f32.mrb[0].mxu0
        %1337 = vmatprep.mubr.f32.mxu0 0.0
        %v1338 = vand.u32 %v1168, 4294901760
        %v1339 = vsub.f32 %v1168, %v1338
        %v1340 = vand.u32 %v1339, 4294901760
        %v1341 = vsub.f32 %v1339, %v1340
        %v1342 = vand.u32 %v1341, 4294901760
        %1343 = vmatmul.mubr.f32.gmra.mrb[0].mxu0 %v1342
        %v1344 = vpop.f32.mrb[0].mxu0
        %v1345 = vadd.f32 0.0, %v1344
        %v1346 = vpop.f32.mrb[0].mxu0
        %1347 = vmatprep.mubr.f32.mxu0 0.0
        %v1348 = vand.u32 %v1171, 4294901760
        %v1349 = vsub.f32 %v1171, %v1348
        %v1350 = vand.u32 %v1349, 4294901760
        %v1351 = vsub.f32 %v1349, %v1350
        %v1352 = vand.u32 %v1351, 4294901760
        %1353 = vmatmul.mubr.f32.gmra.mrb[0].mxu0 %v1352
        %v1354 = vpop.f32.mrb[0].mxu0
        %v1355 = vadd.f32 0.0, %v1354
        %v1356 = vpop.f32.mrb[0].mxu0
        %1357 = vmatprep.mubr.f32.mxu0 0.0
        %v1358 = vand.u32 %v1174, 4294901760
        %v1359 = vsub.f32 %v1174, %v1358
        %v1360 = vand.u32 %v1359, 4294901760
        %v1361 = vsub.f32 %v1359, %v1360
        %v1362 = vand.u32 %v1361, 4294901760
        %1363 = vmatmul.mubr.f32.gmra.mrb[0].mxu0 %v1362
        %v1364 = vpop.f32.mrb[0].mxu0
        %v1365 = vadd.f32 0.0, %v1364
        %v1366 = vpop.f32.mrb[0].mxu0
        %1367 = vmatprep.mubr.f32.mxu0 0.0
        %v1368 = vand.u32 %v1177, 4294901760
        %v1369 = vsub.f32 %v1177, %v1368
        %v1370 = vand.u32 %v1369, 4294901760
        %v1371 = vsub.f32 %v1369, %v1370
        %v1372 = vand.u32 %v1371, 4294901760
        %1373 = vmatmul.mubr.f32.gmra.mrb[0].mxu0 %v1372
        %v1374 = vpop.f32.mrb[0].mxu0
        %v1375 = vadd.f32 0.0, %v1374
        %v1376 = vpop.f32.mrb[0].mxu0
        %1377 = vmatprep.mubr.f32.mxu0 0.0
        %v1378 = vand.u32 %v1180, 4294901760
        %v1379 = vsub.f32 %v1180, %v1378
        %v1380 = vand.u32 %v1379, 4294901760
        %v1381 = vsub.f32 %v1379, %v1380
        %v1382 = vand.u32 %v1381, 4294901760
        %1383 = vmatmul.mubr.f32.gmra.mrb[0].mxu0 %v1382
        %v1384 = vpop.f32.mrb[0].mxu0
        %v1385 = vadd.f32 0.0, %v1384
        %v1386 = vpop.f32.mrb[0].mxu0
        %1387 = vmatprep.mubr.f32.mxu0 0.0
        %v1388 = vand.u32 %v1183, 4294901760
        %v1389 = vsub.f32 %v1183, %v1388
        %v1390 = vand.u32 %v1389, 4294901760
        %v1391 = vsub.f32 %v1389, %v1390
        %v1392 = vand.u32 %v1391, 4294901760
        %1393 = vmatmul.mubr.f32.gmra.mrb[0].mxu0 %v1392
        %v1394 = vpop.f32.mrb[0].mxu0
        %v1395 = vadd.f32 0.0, %v1394
        %v1396 = vpop.f32.mrb[0].mxu0
        %1397 = vmatprep.mubr.f32.mxu0 0.0
        %v1398 = vand.u32 %v1186, 4294901760
        %v1399 = vsub.f32 %v1186, %v1398
        %v1400 = vand.u32 %v1399, 4294901760
        %v1401 = vsub.f32 %v1399, %v1400
        %v1402 = vand.u32 %v1401, 4294901760
        %1403 = vmatmul.mubr.f32.gmra.mrb[0].mxu0 %v1402
        %v1404 = vpop.f32.mrb[0].mxu0
        %v1405 = vadd.f32 0.0, %v1404
        %v1406 = vpop.f32.mrb[0].mxu0
        %1407 = vmatprep.mubr.f32.mxu0 0.0
        %v1408 = vand.u32 %v1189, 4294901760
        %v1409 = vsub.f32 %v1189, %v1408
        %v1410 = vand.u32 %v1409, 4294901760
        %v1411 = vsub.f32 %v1409, %v1410
        %v1412 = vand.u32 %v1411, 4294901760
        %1413 = vmatmul.mubr.f32.gmra.mrb[0].mxu0 %v1412
        %v1414 = vpop.f32.mrb[0].mxu0
        %v1415 = vadd.f32 0.0, %v1414
        %v1416 = vpop.f32.mrb[0].mxu0
        %1417 = vdwg.mxu0
        %1418 = vmatprep.subr.mxu0 0.0
        %v1419 = vand.u32 %v226, 4294901760
        %v1420 = vsub.f32 %v226, %v1419
        %v1421 = vand.u32 %v1420, 4294901760
        %v1422 = vsub.f32 %v1420, %v1421
        %v1423 = vand.u32 %v1422, 4294901760
        %1424 = vmatpush1.msra.mxu0 %v1423
        %1425 = vmatprep.subr.mxu0 0.0
        %v1426 = vand.u32 %v227, 4294901760
        %v1427 = vsub.f32 %v227, %v1426
        %v1428 = vand.u32 %v1427, 4294901760
        %v1429 = vsub.f32 %v1427, %v1428
        %v1430 = vand.u32 %v1429, 4294901760
        %1431 = vmatpush1.msra.mxu0 %v1430
        %1432 = vmatprep.subr.mxu0 0.0
        %1433 = vmatpush1.msra.mxu0 0.0
        %1434 = vmatprep.subr.mxu0 0.0
        %1435 = vmatpush1.msra.mxu0 0.0
        %1436 = vmatprep.subr.mxu0 0.0
        %1437 = vmatpush1.msra.mxu0 0.0
        %1438 = vmatprep.subr.mxu0 0.0
        %1439 = vmatpush1.msra.mxu0 0.0
        %1440 = vmatprep.subr.mxu0 0.0
        %1441 = vmatpush1.msra.mxu0 0.0
        %1442 = vmatprep.subr.mxu0 0.0
        %1443 = vmatpush1.msra.mxu0 0.0
        %1444 = vmatprep.subr.mxu0 0.0
        %1445 = vmatpush1.msra.mxu0 0.0
        %1446 = vmatprep.subr.mxu0 0.0
        %1447 = vmatpush1.msra.mxu0 0.0
        %1448 = vmatprep.subr.mxu0 0.0
        %1449 = vmatpush1.msra.mxu0 0.0
        %1450 = vmatprep.subr.mxu0 0.0
        %1451 = vmatpush1.msra.mxu0 0.0
        %1452 = vmatprep.subr.mxu0 0.0
        %1453 = vmatpush1.msra.mxu0 0.0
        %1454 = vmatprep.subr.mxu0 0.0
        %1455 = vmatpush1.msra.mxu0 0.0
        %1456 = vmatprep.subr.mxu0 0.0
        %1457 = vmatpush1.msra.mxu0 0.0
        %1458 = vmatprep.subr.mxu0 0.0
        %1459 = vmatpush1.msra.mxu0 0.0
        %1460 = vmatprep.subr.mxu0 0.0
        %1461 = vmatpush1.msra.mxu0 0.0
        %1462 = vmatprep.subr.mxu0 0.0
        %1463 = vmatpush1.msra.mxu0 0.0
        %1464 = vmatprep.subr.mxu0 0.0
        %1465 = vmatpush1.msra.mxu0 0.0
        %1466 = vmatprep.subr.mxu0 0.0
        %1467 = vmatpush1.msra.mxu0 0.0
        %1468 = vmatprep.subr.mxu0 0.0
        %1469 = vmatpush1.msra.mxu0 0.0
        %1470 = vmatprep.subr.mxu0 0.0
        %1471 = vmatpush1.msra.mxu0 0.0
        %1472 = vmatprep.subr.mxu0 0.0
        %1473 = vmatpush1.msra.mxu0 0.0
        %1474 = vmatprep.subr.mxu0 0.0
        %1475 = vmatpush1.msra.mxu0 0.0
        %1476 = vmatprep.subr.mxu0 0.0
        %1477 = vmatpush1.msra.mxu0 0.0
        %1478 = vmatprep.subr.mxu0 0.0
        %1479 = vmatpush1.msra.mxu0 0.0
        %1480 = vmatprep.subr.mxu0 0.0
        %1481 = vmatpush1.msra.mxu0 0.0
        %1482 = vmatprep.subr.mxu0 0.0
        %1483 = vmatpush1.msra.mxu0 0.0
        %1484 = vmatprep.subr.mxu0 0.0
        %1485 = vmatpush1.msra.mxu0 0.0
        %1486 = vmatprep.subr.mxu0 0.0
        %1487 = vmatpush1.msra.mxu0 0.0
        %1488 = vmatprep.subr.mxu0 0.0
        %1489 = vmatpush1.msra.mxu0 0.0
        %1490 = vmatprep.subr.mxu0 0.0
        %1491 = vmatpush1.msra.mxu0 0.0
        %1492 = vmatprep.mubr.f32.mxu0 0.0
        %v1493 = vand.u32 %v1144, 4294901760
        %1494 = vmatmul.mubr.f32.gmra.mrb[0].mxu0 %v1493
        %v1495 = vpop.f32.mrb[0].mxu0
        %v1496 = vadd.f32 %v1265, %v1495
        %v1497 = vpop.f32.mrb[0].mxu0
        %1498 = vmatprep.mubr.f32.mxu0 0.0
        %v1499 = vand.u32 %v1147, 4294901760
        %1500 = vmatmul.mubr.f32.gmra.mrb[0].mxu0 %v1499
        %v1501 = vpop.f32.mrb[0].mxu0
        %v1502 = vadd.f32 %v1275, %v1501
        %v1503 = vpop.f32.mrb[0].mxu0
        %1504 = vmatprep.mubr.f32.mxu0 0.0
        %v1505 = vand.u32 %v1150, 4294901760
        %1506 = vmatmul.mubr.f32.gmra.mrb[0].mxu0 %v1505
        %v1507 = vpop.f32.mrb[0].mxu0
        %v1508 = vadd.f32 %v1285, %v1507
        %v1509 = vpop.f32.mrb[0].mxu0
        %1510 = vmatprep.mubr.f32.mxu0 0.0
        %v1511 = vand.u32 %v1153, 4294901760
        %1512 = vmatmul.mubr.f32.gmra.mrb[0].mxu0 %v1511
        %v1513 = vpop.f32.mrb[0].mxu0
        %v1514 = vadd.f32 %v1295, %v1513
        %v1515 = vpop.f32.mrb[0].mxu0
        %1516 = vmatprep.mubr.f32.mxu0 0.0
        %v1517 = vand.u32 %v1156, 4294901760
        %1518 = vmatmul.mubr.f32.gmra.mrb[0].mxu0 %v1517
        %v1519 = vpop.f32.mrb[0].mxu0
        %v1520 = vadd.f32 %v1305, %v1519
        %v1521 = vpop.f32.mrb[0].mxu0
        %1522 = vmatprep.mubr.f32.mxu0 0.0
        %v1523 = vand.u32 %v1159, 4294901760
        %1524 = vmatmul.mubr.f32.gmra.mrb[0].mxu0 %v1523
        %v1525 = vpop.f32.mrb[0].mxu0
        %v1526 = vadd.f32 %v1315, %v1525
        %v1527 = vpop.f32.mrb[0].mxu0
        %1528 = vmatprep.mubr.f32.mxu0 0.0
        %v1529 = vand.u32 %v1162, 4294901760
        %1530 = vmatmul.mubr.f32.gmra.mrb[0].mxu0 %v1529
        %v1531 = vpop.f32.mrb[0].mxu0
        %v1532 = vadd.f32 %v1325, %v1531
        %v1533 = vpop.f32.mrb[0].mxu0
        %1534 = vmatprep.mubr.f32.mxu0 0.0
        %v1535 = vand.u32 %v1165, 4294901760
        %1536 = vmatmul.mubr.f32.gmra.mrb[0].mxu0 %v1535
        %v1537 = vpop.f32.mrb[0].mxu0
        %v1538 = vadd.f32 %v1335, %v1537
        %v1539 = vpop.f32.mrb[0].mxu0
        %1540 = vmatprep.mubr.f32.mxu0 0.0
        %v1541 = vand.u32 %v1168, 4294901760
        %1542 = vmatmul.mubr.f32.gmra.mrb[0].mxu0 %v1541
        %v1543 = vpop.f32.mrb[0].mxu0
        %v1544 = vadd.f32 %v1345, %v1543
        %v1545 = vpop.f32.mrb[0].mxu0
        %1546 = vmatprep.mubr.f32.mxu0 0.0
        %v1547 = vand.u32 %v1171, 4294901760
        %1548 = vmatmul.mubr.f32.gmra.mrb[0].mxu0 %v1547
        %v1549 = vpop.f32.mrb[0].mxu0
        %v1550 = vadd.f32 %v1355, %v1549
        %v1551 = vpop.f32.mrb[0].mxu0
        %1552 = vmatprep.mubr.f32.mxu0 0.0
        %v1553 = vand.u32 %v1174, 4294901760
        %1554 = vmatmul.mubr.f32.gmra.mrb[0].mxu0 %v1553
        %v1555 = vpop.f32.mrb[0].mxu0
        %v1556 = vadd.f32 %v1365, %v1555
        %v1557 = vpop.f32.mrb[0].mxu0
        %1558 = vmatprep.mubr.f32.mxu0 0.0
        %v1559 = vand.u32 %v1177, 4294901760
        %1560 = vmatmul.mubr.f32.gmra.mrb[0].mxu0 %v1559
        %v1561 = vpop.f32.mrb[0].mxu0
        %v1562 = vadd.f32 %v1375, %v1561
        %v1563 = vpop.f32.mrb[0].mxu0
        %1564 = vmatprep.mubr.f32.mxu0 0.0
        %v1565 = vand.u32 %v1180, 4294901760
        %1566 = vmatmul.mubr.f32.gmra.mrb[0].mxu0 %v1565
        %v1567 = vpop.f32.mrb[0].mxu0
        %v1568 = vadd.f32 %v1385, %v1567
        %v1569 = vpop.f32.mrb[0].mxu0
        %1570 = vmatprep.mubr.f32.mxu0 0.0
        %v1571 = vand.u32 %v1183, 4294901760
        %1572 = vmatmul.mubr.f32.gmra.mrb[0].mxu0 %v1571
        %v1573 = vpop.f32.mrb[0].mxu0
        %v1574 = vadd.f32 %v1395, %v1573
        %v1575 = vpop.f32.mrb[0].mxu0
        %1576 = vmatprep.mubr.f32.mxu0 0.0
        %v1577 = vand.u32 %v1186, 4294901760
        %1578 = vmatmul.mubr.f32.gmra.mrb[0].mxu0 %v1577
        %v1579 = vpop.f32.mrb[0].mxu0
        %v1580 = vadd.f32 %v1405, %v1579
        %v1581 = vpop.f32.mrb[0].mxu0
        %1582 = vmatprep.mubr.f32.mxu0 0.0
        %v1583 = vand.u32 %v1189, 4294901760
        %1584 = vmatmul.mubr.f32.gmra.mrb[0].mxu0 %v1583
        %v1585 = vpop.f32.mrb[0].mxu0
        %v1586 = vadd.f32 %v1415, %v1585
        %v1587 = vpop.f32.mrb[0].mxu0
        %1588 = vdwg.mxu0
        %1589 = vmatprep.subr.mxu0 0.0
        %v1590 = vand.u32 %v226, 4294901760
        %v1591 = vsub.f32 %v226, %v1590
        %1592 = vmatpush1.msra.mxu0 %v1591
        %1593 = vmatprep.subr.mxu0 0.0
        %v1594 = vand.u32 %v227, 4294901760
        %v1595 = vsub.f32 %v227, %v1594
        %1596 = vmatpush1.msra.mxu0 %v1595
        %1597 = vmatprep.subr.mxu0 0.0
        %1598 = vmatpush1.msra.mxu0 0.0
        %1599 = vmatprep.subr.mxu0 0.0
        %1600 = vmatpush1.msra.mxu0 0.0
        %1601 = vmatprep.subr.mxu0 0.0
        %1602 = vmatpush1.msra.mxu0 0.0
        %1603 = vmatprep.subr.mxu0 0.0
        %1604 = vmatpush1.msra.mxu0 0.0
        %1605 = vmatprep.subr.mxu0 0.0
        %1606 = vmatpush1.msra.mxu0 0.0
        %1607 = vmatprep.subr.mxu0 0.0
        %1608 = vmatpush1.msra.mxu0 0.0
        %1609 = vmatprep.subr.mxu0 0.0
        %1610 = vmatpush1.msra.mxu0 0.0
        %1611 = vmatprep.subr.mxu0 0.0
        %1612 = vmatpush1.msra.mxu0 0.0
        %1613 = vmatprep.subr.mxu0 0.0
        %1614 = vmatpush1.msra.mxu0 0.0
        %1615 = vmatprep.subr.mxu0 0.0
        %1616 = vmatpush1.msra.mxu0 0.0
        %1617 = vmatprep.subr.mxu0 0.0
        %1618 = vmatpush1.msra.mxu0 0.0
        %1619 = vmatprep.subr.mxu0 0.0
        %1620 = vmatpush1.msra.mxu0 0.0
        %1621 = vmatprep.subr.mxu0 0.0
        %1622 = vmatpush1.msra.mxu0 0.0
        %1623 = vmatprep.subr.mxu0 0.0
        %1624 = vmatpush1.msra.mxu0 0.0
        %1625 = vmatprep.subr.mxu0 0.0
        %1626 = vmatpush1.msra.mxu0 0.0
        %1627 = vmatprep.subr.mxu0 0.0
        %1628 = vmatpush1.msra.mxu0 0.0
        %1629 = vmatprep.subr.mxu0 0.0
        %1630 = vmatpush1.msra.mxu0 0.0
        %1631 = vmatprep.subr.mxu0 0.0
        %1632 = vmatpush1.msra.mxu0 0.0
        %1633 = vmatprep.subr.mxu0 0.0
        %1634 = vmatpush1.msra.mxu0 0.0
        %1635 = vmatprep.subr.mxu0 0.0
        %1636 = vmatpush1.msra.mxu0 0.0
        %1637 = vmatprep.subr.mxu0 0.0
        %1638 = vmatpush1.msra.mxu0 0.0
        %1639 = vmatprep.subr.mxu0 0.0
        %1640 = vmatpush1.msra.mxu0 0.0
        %1641 = vmatprep.subr.mxu0 0.0
        %1642 = vmatpush1.msra.mxu0 0.0
        %1643 = vmatprep.subr.mxu0 0.0
        %1644 = vmatpush1.msra.mxu0 0.0
        %1645 = vmatprep.subr.mxu0 0.0
        %1646 = vmatpush1.msra.mxu0 0.0
        %1647 = vmatprep.subr.mxu0 0.0
        %1648 = vmatpush1.msra.mxu0 0.0
        %1649 = vmatprep.subr.mxu0 0.0
        %1650 = vmatpush1.msra.mxu0 0.0
        %1651 = vmatprep.subr.mxu0 0.0
        %1652 = vmatpush1.msra.mxu0 0.0
        %1653 = vmatprep.subr.mxu0 0.0
        %1654 = vmatpush1.msra.mxu0 0.0
        %1655 = vmatprep.subr.mxu0 0.0
        %1656 = vmatpush1.msra.mxu0 0.0
        %1657 = vmatprep.mubr.f32.mxu0 0.0
        %v1658 = vand.u32 %v1144, 4294901760
        %v1659 = vsub.f32 %v1144, %v1658
        %1660 = vmatmul.mubr.f32.gmra.mrb[0].mxu0 %v1659
        %v1661 = vpop.f32.mrb[0].mxu0
        %v1662 = vadd.f32 %v1496, %v1661
        %v1663 = vpop.f32.mrb[0].mxu0
        %1664 = vmatprep.mubr.f32.mxu0 0.0
        %v1665 = vand.u32 %v1147, 4294901760
        %v1666 = vsub.f32 %v1147, %v1665
        %1667 = vmatmul.mubr.f32.gmra.mrb[0].mxu0 %v1666
        %v1668 = vpop.f32.mrb[0].mxu0
        %v1669 = vadd.f32 %v1502, %v1668
        %v1670 = vpop.f32.mrb[0].mxu0
        %1671 = vmatprep.mubr.f32.mxu0 0.0
        %v1672 = vand.u32 %v1150, 4294901760
        %v1673 = vsub.f32 %v1150, %v1672
        %1674 = vmatmul.mubr.f32.gmra.mrb[0].mxu0 %v1673
        %v1675 = vpop.f32.mrb[0].mxu0
        %v1676 = vadd.f32 %v1508, %v1675
        %v1677 = vpop.f32.mrb[0].mxu0
        %1678 = vmatprep.mubr.f32.mxu0 0.0
        %v1679 = vand.u32 %v1153, 4294901760
        %v1680 = vsub.f32 %v1153, %v1679
        %1681 = vmatmul.mubr.f32.gmra.mrb[0].mxu0 %v1680
        %v1682 = vpop.f32.mrb[0].mxu0
        %v1683 = vadd.f32 %v1514, %v1682
        %v1684 = vpop.f32.mrb[0].mxu0
        %1685 = vmatprep.mubr.f32.mxu0 0.0
        %v1686 = vand.u32 %v1156, 4294901760
        %v1687 = vsub.f32 %v1156, %v1686
        %1688 = vmatmul.mubr.f32.gmra.mrb[0].mxu0 %v1687
        %v1689 = vpop.f32.mrb[0].mxu0
        %v1690 = vadd.f32 %v1520, %v1689
        %v1691 = vpop.f32.mrb[0].mxu0
        %1692 = vmatprep.mubr.f32.mxu0 0.0
        %v1693 = vand.u32 %v1159, 4294901760
        %v1694 = vsub.f32 %v1159, %v1693
        %1695 = vmatmul.mubr.f32.gmra.mrb[0].mxu0 %v1694
        %v1696 = vpop.f32.mrb[0].mxu0
        %v1697 = vadd.f32 %v1526, %v1696
        %v1698 = vpop.f32.mrb[0].mxu0
        %1699 = vmatprep.mubr.f32.mxu0 0.0
        %v1700 = vand.u32 %v1162, 4294901760
        %v1701 = vsub.f32 %v1162, %v1700
        %1702 = vmatmul.mubr.f32.gmra.mrb[0].mxu0 %v1701
        %v1703 = vpop.f32.mrb[0].mxu0
        %v1704 = vadd.f32 %v1532, %v1703
        %v1705 = vpop.f32.mrb[0].mxu0
        %1706 = vmatprep.mubr.f32.mxu0 0.0
        %v1707 = vand.u32 %v1165, 4294901760
        %v1708 = vsub.f32 %v1165, %v1707
        %1709 = vmatmul.mubr.f32.gmra.mrb[0].mxu0 %v1708
        %v1710 = vpop.f32.mrb[0].mxu0
        %v1711 = vadd.f32 %v1538, %v1710
        %v1712 = vpop.f32.mrb[0].mxu0
        %1713 = vmatprep.mubr.f32.mxu0 0.0
        %v1714 = vand.u32 %v1168, 4294901760
        %v1715 = vsub.f32 %v1168, %v1714
        %1716 = vmatmul.mubr.f32.gmra.mrb[0].mxu0 %v1715
        %v1717 = vpop.f32.mrb[0].mxu0
        %v1718 = vadd.f32 %v1544, %v1717
        %v1719 = vpop.f32.mrb[0].mxu0
        %1720 = vmatprep.mubr.f32.mxu0 0.0
        %v1721 = vand.u32 %v1171, 4294901760
        %v1722 = vsub.f32 %v1171, %v1721
        %1723 = vmatmul.mubr.f32.gmra.mrb[0].mxu0 %v1722
        %v1724 = vpop.f32.mrb[0].mxu0
        %v1725 = vadd.f32 %v1550, %v1724
        %v1726 = vpop.f32.mrb[0].mxu0
        %1727 = vmatprep.mubr.f32.mxu0 0.0
        %v1728 = vand.u32 %v1174, 4294901760
        %v1729 = vsub.f32 %v1174, %v1728
        %1730 = vmatmul.mubr.f32.gmra.mrb[0].mxu0 %v1729
        %v1731 = vpop.f32.mrb[0].mxu0
        %v1732 = vadd.f32 %v1556, %v1731
        %v1733 = vpop.f32.mrb[0].mxu0
        %1734 = vmatprep.mubr.f32.mxu0 0.0
        %v1735 = vand.u32 %v1177, 4294901760
        %v1736 = vsub.f32 %v1177, %v1735
        %1737 = vmatmul.mubr.f32.gmra.mrb[0].mxu0 %v1736
        %v1738 = vpop.f32.mrb[0].mxu0
        %v1739 = vadd.f32 %v1562, %v1738
        %v1740 = vpop.f32.mrb[0].mxu0
        %1741 = vmatprep.mubr.f32.mxu0 0.0
        %v1742 = vand.u32 %v1180, 4294901760
        %v1743 = vsub.f32 %v1180, %v1742
        %1744 = vmatmul.mubr.f32.gmra.mrb[0].mxu0 %v1743
        %v1745 = vpop.f32.mrb[0].mxu0
        %v1746 = vadd.f32 %v1568, %v1745
        %v1747 = vpop.f32.mrb[0].mxu0
        %1748 = vmatprep.mubr.f32.mxu0 0.0
        %v1749 = vand.u32 %v1183, 4294901760
        %v1750 = vsub.f32 %v1183, %v1749
        %1751 = vmatmul.mubr.f32.gmra.mrb[0].mxu0 %v1750
        %v1752 = vpop.f32.mrb[0].mxu0
        %v1753 = vadd.f32 %v1574, %v1752
        %v1754 = vpop.f32.mrb[0].mxu0
        %1755 = vmatprep.mubr.f32.mxu0 0.0
        %v1756 = vand.u32 %v1186, 4294901760
        %v1757 = vsub.f32 %v1186, %v1756
        %1758 = vmatmul.mubr.f32.gmra.mrb[0].mxu0 %v1757
        %v1759 = vpop.f32.mrb[0].mxu0
        %v1760 = vadd.f32 %v1580, %v1759
        %v1761 = vpop.f32.mrb[0].mxu0
        %1762 = vmatprep.mubr.f32.mxu0 0.0
        %v1763 = vand.u32 %v1189, 4294901760
        %v1764 = vsub.f32 %v1189, %v1763
        %1765 = vmatmul.mubr.f32.gmra.mrb[0].mxu0 %v1764
        %v1766 = vpop.f32.mrb[0].mxu0
        %v1767 = vadd.f32 %v1586, %v1766
        %v1768 = vpop.f32.mrb[0].mxu0
        %1769 = vdwg.mxu0
        %1770 = vmatprep.subr.mxu0 0.0
        %v1771 = vand.u32 %v226, 4294901760
        %1772 = vmatpush1.msra.mxu0 %v1771
        %1773 = vmatprep.subr.mxu0 0.0
        %v1774 = vand.u32 %v227, 4294901760
        %1775 = vmatpush1.msra.mxu0 %v1774
        %1776 = vmatprep.subr.mxu0 0.0
        %1777 = vmatpush1.msra.mxu0 0.0
        %1778 = vmatprep.subr.mxu0 0.0
        %1779 = vmatpush1.msra.mxu0 0.0
        %1780 = vmatprep.subr.mxu0 0.0
        %1781 = vmatpush1.msra.mxu0 0.0
        %1782 = vmatprep.subr.mxu0 0.0
        %1783 = vmatpush1.msra.mxu0 0.0
        %1784 = vmatprep.subr.mxu0 0.0
        %1785 = vmatpush1.msra.mxu0 0.0
        %1786 = vmatprep.subr.mxu0 0.0
        %1787 = vmatpush1.msra.mxu0 0.0
        %1788 = vmatprep.subr.mxu0 0.0
        %1789 = vmatpush1.msra.mxu0 0.0
        %1790 = vmatprep.subr.mxu0 0.0
        %1791 = vmatpush1.msra.mxu0 0.0
        %1792 = vmatprep.subr.mxu0 0.0
        %1793 = vmatpush1.msra.mxu0 0.0
        %1794 = vmatprep.subr.mxu0 0.0
        %1795 = vmatpush1.msra.mxu0 0.0
        %1796 = vmatprep.subr.mxu0 0.0
        %1797 = vmatpush1.msra.mxu0 0.0
        %1798 = vmatprep.subr.mxu0 0.0
        %1799 = vmatpush1.msra.mxu0 0.0
        %1800 = vmatprep.subr.mxu0 0.0
        %1801 = vmatpush1.msra.mxu0 0.0
        %1802 = vmatprep.subr.mxu0 0.0
        %1803 = vmatpush1.msra.mxu0 0.0
        %1804 = vmatprep.subr.mxu0 0.0
        %1805 = vmatpush1.msra.mxu0 0.0
        %1806 = vmatprep.subr.mxu0 0.0
        %1807 = vmatpush1.msra.mxu0 0.0
        %1808 = vmatprep.subr.mxu0 0.0
        %1809 = vmatpush1.msra.mxu0 0.0
        %1810 = vmatprep.subr.mxu0 0.0
        %1811 = vmatpush1.msra.mxu0 0.0
        %1812 = vmatprep.subr.mxu0 0.0
        %1813 = vmatpush1.msra.mxu0 0.0
        %1814 = vmatprep.subr.mxu0 0.0
        %1815 = vmatpush1.msra.mxu0 0.0
        %1816 = vmatprep.subr.mxu0 0.0
        %1817 = vmatpush1.msra.mxu0 0.0
        %1818 = vmatprep.subr.mxu0 0.0
        %1819 = vmatpush1.msra.mxu0 0.0
        %1820 = vmatprep.subr.mxu0 0.0
        %1821 = vmatpush1.msra.mxu0 0.0
        %1822 = vmatprep.subr.mxu0 0.0
        %1823 = vmatpush1.msra.mxu0 0.0
        %1824 = vmatprep.subr.mxu0 0.0
        %1825 = vmatpush1.msra.mxu0 0.0
        %1826 = vmatprep.subr.mxu0 0.0
        %1827 = vmatpush1.msra.mxu0 0.0
        %1828 = vmatprep.subr.mxu0 0.0
        %1829 = vmatpush1.msra.mxu0 0.0
        %1830 = vmatprep.subr.mxu0 0.0
        %1831 = vmatpush1.msra.mxu0 0.0
        %1832 = vmatprep.subr.mxu0 0.0
        %1833 = vmatpush1.msra.mxu0 0.0
        %1834 = vmatprep.subr.mxu0 0.0
        %1835 = vmatpush1.msra.mxu0 0.0
        %1836 = vmatprep.mubr.f32.mxu0 0.0
        %v1837 = vand.u32 %v1144, 4294901760
        %v1838 = vsub.f32 %v1144, %v1837
        %v1839 = vand.u32 %v1838, 4294901760
        %1840 = vmatmul.mubr.f32.gmra.mrb[0].mxu0 %v1839
        %v1841 = vpop.f32.mrb[0].mxu0
        %v1842 = vadd.f32 %v1662, %v1841
        %v1843 = vpop.f32.mrb[0].mxu0
        %1844 = vmatprep.mubr.f32.mxu0 0.0
        %v1845 = vand.u32 %v1147, 4294901760
        %v1846 = vsub.f32 %v1147, %v1845
        %v1847 = vand.u32 %v1846, 4294901760
        %1848 = vmatmul.mubr.f32.gmra.mrb[0].mxu0 %v1847
        %v1849 = vpop.f32.mrb[0].mxu0
        %v1850 = vadd.f32 %v1669, %v1849
        %v1851 = vpop.f32.mrb[0].mxu0
        %1852 = vmatprep.mubr.f32.mxu0 0.0
        %v1853 = vand.u32 %v1150, 4294901760
        %v1854 = vsub.f32 %v1150, %v1853
        %v1855 = vand.u32 %v1854, 4294901760
        %1856 = vmatmul.mubr.f32.gmra.mrb[0].mxu0 %v1855
        %v1857 = vpop.f32.mrb[0].mxu0
        %v1858 = vadd.f32 %v1676, %v1857
        %v1859 = vpop.f32.mrb[0].mxu0
        %1860 = vmatprep.mubr.f32.mxu0 0.0
        %v1861 = vand.u32 %v1153, 4294901760
        %v1862 = vsub.f32 %v1153, %v1861
        %v1863 = vand.u32 %v1862, 4294901760
        %1864 = vmatmul.mubr.f32.gmra.mrb[0].mxu0 %v1863
        %v1865 = vpop.f32.mrb[0].mxu0
        %v1866 = vadd.f32 %v1683, %v1865
        %v1867 = vpop.f32.mrb[0].mxu0
        %1868 = vmatprep.mubr.f32.mxu0 0.0
        %v1869 = vand.u32 %v1156, 4294901760
        %v1870 = vsub.f32 %v1156, %v1869
        %v1871 = vand.u32 %v1870, 4294901760
        %1872 = vmatmul.mubr.f32.gmra.mrb[0].mxu0 %v1871
        %v1873 = vpop.f32.mrb[0].mxu0
        %v1874 = vadd.f32 %v1690, %v1873
        %v1875 = vpop.f32.mrb[0].mxu0
        %1876 = vmatprep.mubr.f32.mxu0 0.0
        %v1877 = vand.u32 %v1159, 4294901760
        %v1878 = vsub.f32 %v1159, %v1877
        %v1879 = vand.u32 %v1878, 4294901760
        %1880 = vmatmul.mubr.f32.gmra.mrb[0].mxu0 %v1879
        %v1881 = vpop.f32.mrb[0].mxu0
        %v1882 = vadd.f32 %v1697, %v1881
        %v1883 = vpop.f32.mrb[0].mxu0
        %1884 = vmatprep.mubr.f32.mxu0 0.0
        %v1885 = vand.u32 %v1162, 4294901760
        %v1886 = vsub.f32 %v1162, %v1885
        %v1887 = vand.u32 %v1886, 4294901760
        %1888 = vmatmul.mubr.f32.gmra.mrb[0].mxu0 %v1887
        %v1889 = vpop.f32.mrb[0].mxu0
        %v1890 = vadd.f32 %v1704, %v1889
        %v1891 = vpop.f32.mrb[0].mxu0
        %1892 = vmatprep.mubr.f32.mxu0 0.0
        %v1893 = vand.u32 %v1165, 4294901760
        %v1894 = vsub.f32 %v1165, %v1893
        %v1895 = vand.u32 %v1894, 4294901760
        %1896 = vmatmul.mubr.f32.gmra.mrb[0].mxu0 %v1895
        %v1897 = vpop.f32.mrb[0].mxu0
        %v1898 = vadd.f32 %v1711, %v1897
        %v1899 = vpop.f32.mrb[0].mxu0
        %1900 = vmatprep.mubr.f32.mxu0 0.0
        %v1901 = vand.u32 %v1168, 4294901760
        %v1902 = vsub.f32 %v1168, %v1901
        %v1903 = vand.u32 %v1902, 4294901760
        %1904 = vmatmul.mubr.f32.gmra.mrb[0].mxu0 %v1903
        %v1905 = vpop.f32.mrb[0].mxu0
        %v1906 = vadd.f32 %v1718, %v1905
        %v1907 = vpop.f32.mrb[0].mxu0
        %1908 = vmatprep.mubr.f32.mxu0 0.0
        %v1909 = vand.u32 %v1171, 4294901760
        %v1910 = vsub.f32 %v1171, %v1909
        %v1911 = vand.u32 %v1910, 4294901760
        %1912 = vmatmul.mubr.f32.gmra.mrb[0].mxu0 %v1911
        %v1913 = vpop.f32.mrb[0].mxu0
        %v1914 = vadd.f32 %v1725, %v1913
        %v1915 = vpop.f32.mrb[0].mxu0
        %1916 = vmatprep.mubr.f32.mxu0 0.0
        %v1917 = vand.u32 %v1174, 4294901760
        %v1918 = vsub.f32 %v1174, %v1917
        %v1919 = vand.u32 %v1918, 4294901760
        %1920 = vmatmul.mubr.f32.gmra.mrb[0].mxu0 %v1919
        %v1921 = vpop.f32.mrb[0].mxu0
        %v1922 = vadd.f32 %v1732, %v1921
        %v1923 = vpop.f32.mrb[0].mxu0
        %1924 = vmatprep.mubr.f32.mxu0 0.0
        %v1925 = vand.u32 %v1177, 4294901760
        %v1926 = vsub.f32 %v1177, %v1925
        %v1927 = vand.u32 %v1926, 4294901760
        %1928 = vmatmul.mubr.f32.gmra.mrb[0].mxu0 %v1927
        %v1929 = vpop.f32.mrb[0].mxu0
        %v1930 = vadd.f32 %v1739, %v1929
        %v1931 = vpop.f32.mrb[0].mxu0
        %1932 = vmatprep.mubr.f32.mxu0 0.0
        %v1933 = vand.u32 %v1180, 4294901760
        %v1934 = vsub.f32 %v1180, %v1933
        %v1935 = vand.u32 %v1934, 4294901760
        %1936 = vmatmul.mubr.f32.gmra.mrb[0].mxu0 %v1935
        %v1937 = vpop.f32.mrb[0].mxu0
        %v1938 = vadd.f32 %v1746, %v1937
        %v1939 = vpop.f32.mrb[0].mxu0
        %1940 = vmatprep.mubr.f32.mxu0 0.0
        %v1941 = vand.u32 %v1183, 4294901760
        %v1942 = vsub.f32 %v1183, %v1941
        %v1943 = vand.u32 %v1942, 4294901760
        %1944 = vmatmul.mubr.f32.gmra.mrb[0].mxu0 %v1943
        %v1945 = vpop.f32.mrb[0].mxu0
        %v1946 = vadd.f32 %v1753, %v1945
        %v1947 = vpop.f32.mrb[0].mxu0
        %1948 = vmatprep.mubr.f32.mxu0 0.0
        %v1949 = vand.u32 %v1186, 4294901760
        %v1950 = vsub.f32 %v1186, %v1949
        %v1951 = vand.u32 %v1950, 4294901760
        %1952 = vmatmul.mubr.f32.gmra.mrb[0].mxu0 %v1951
        %v1953 = vpop.f32.mrb[0].mxu0
        %v1954 = vadd.f32 %v1760, %v1953
        %v1955 = vpop.f32.mrb[0].mxu0
        %1956 = vmatprep.mubr.f32.mxu0 0.0
        %v1957 = vand.u32 %v1189, 4294901760
        %v1958 = vsub.f32 %v1189, %v1957
        %v1959 = vand.u32 %v1958, 4294901760
        %1960 = vmatmul.mubr.f32.gmra.mrb[0].mxu0 %v1959
        %v1961 = vpop.f32.mrb[0].mxu0
        %v1962 = vadd.f32 %v1767, %v1961
        %v1963 = vpop.f32.mrb[0].mxu0
        %1964 = vdwg.mxu0
        %1965 = vmatprep.subr.mxu0 0.0
        %v1966 = vand.u32 %v226, 4294901760
        %v1967 = vsub.f32 %v226, %v1966
        %v1968 = vand.u32 %v1967, 4294901760
        %1969 = vmatpush1.msra.mxu0 %v1968
        %1970 = vmatprep.subr.mxu0 0.0
        %v1971 = vand.u32 %v227, 4294901760
        %v1972 = vsub.f32 %v227, %v1971
        %v1973 = vand.u32 %v1972, 4294901760
        %1974 = vmatpush1.msra.mxu0 %v1973
        %1975 = vmatprep.subr.mxu0 0.0
        %1976 = vmatpush1.msra.mxu0 0.0
        %1977 = vmatprep.subr.mxu0 0.0
        %1978 = vmatpush1.msra.mxu0 0.0
        %1979 = vmatprep.subr.mxu0 0.0
        %1980 = vmatpush1.msra.mxu0 0.0
        %1981 = vmatprep.subr.mxu0 0.0
        %1982 = vmatpush1.msra.mxu0 0.0
        %1983 = vmatprep.subr.mxu0 0.0
        %1984 = vmatpush1.msra.mxu0 0.0
        %1985 = vmatprep.subr.mxu0 0.0
        %1986 = vmatpush1.msra.mxu0 0.0
        %1987 = vmatprep.subr.mxu0 0.0
        %1988 = vmatpush1.msra.mxu0 0.0
        %1989 = vmatprep.subr.mxu0 0.0
        %1990 = vmatpush1.msra.mxu0 0.0
        %1991 = vmatprep.subr.mxu0 0.0
        %1992 = vmatpush1.msra.mxu0 0.0
        %1993 = vmatprep.subr.mxu0 0.0
        %1994 = vmatpush1.msra.mxu0 0.0
        %1995 = vmatprep.subr.mxu0 0.0
        %1996 = vmatpush1.msra.mxu0 0.0
        %1997 = vmatprep.subr.mxu0 0.0
        %1998 = vmatpush1.msra.mxu0 0.0
        %1999 = vmatprep.subr.mxu0 0.0
        %2000 = vmatpush1.msra.mxu0 0.0
        %2001 = vmatprep.subr.mxu0 0.0
        %2002 = vmatpush1.msra.mxu0 0.0
        %2003 = vmatprep.subr.mxu0 0.0
        %2004 = vmatpush1.msra.mxu0 0.0
        %2005 = vmatprep.subr.mxu0 0.0
        %2006 = vmatpush1.msra.mxu0 0.0
        %2007 = vmatprep.subr.mxu0 0.0
        %2008 = vmatpush1.msra.mxu0 0.0
        %2009 = vmatprep.subr.mxu0 0.0
        %2010 = vmatpush1.msra.mxu0 0.0
        %2011 = vmatprep.subr.mxu0 0.0
        %2012 = vmatpush1.msra.mxu0 0.0
        %2013 = vmatprep.subr.mxu0 0.0
        %2014 = vmatpush1.msra.mxu0 0.0
        %2015 = vmatprep.subr.mxu0 0.0
        %2016 = vmatpush1.msra.mxu0 0.0
        %2017 = vmatprep.subr.mxu0 0.0
        %2018 = vmatpush1.msra.mxu0 0.0
        %2019 = vmatprep.subr.mxu0 0.0
        %2020 = vmatpush1.msra.mxu0 0.0
        %2021 = vmatprep.subr.mxu0 0.0
        %2022 = vmatpush1.msra.mxu0 0.0
        %2023 = vmatprep.subr.mxu0 0.0
        %2024 = vmatpush1.msra.mxu0 0.0
        %2025 = vmatprep.subr.mxu0 0.0
        %2026 = vmatpush1.msra.mxu0 0.0
        %2027 = vmatprep.subr.mxu0 0.0
        %2028 = vmatpush1.msra.mxu0 0.0
        %2029 = vmatprep.subr.mxu0 0.0
        %2030 = vmatpush1.msra.mxu0 0.0
        %2031 = vmatprep.subr.mxu0 0.0
        %2032 = vmatpush1.msra.mxu0 0.0
        %2033 = vmatprep.subr.mxu0 0.0
        %2034 = vmatpush1.msra.mxu0 0.0
        %2035 = vmatprep.mubr.f32.mxu0 0.0
        %v2036 = vand.u32 %v1144, 4294901760
        %2037 = vmatmul.mubr.f32.gmra.mrb[0].mxu0 %v2036
        %v2038 = vpop.f32.mrb[0].mxu0
        %v2039 = vadd.f32 %v1842, %v2038
        %v2040 = vpop.f32.mrb[0].mxu0
        %2041 = vmatprep.mubr.f32.mxu0 0.0
        %v2042 = vand.u32 %v1147, 4294901760
        %2043 = vmatmul.mubr.f32.gmra.mrb[0].mxu0 %v2042
        %v2044 = vpop.f32.mrb[0].mxu0
        %v2045 = vadd.f32 %v1850, %v2044
        %v2046 = vpop.f32.mrb[0].mxu0
        %2047 = vmatprep.mubr.f32.mxu0 0.0
        %v2048 = vand.u32 %v1150, 4294901760
        %2049 = vmatmul.mubr.f32.gmra.mrb[0].mxu0 %v2048
        %v2050 = vpop.f32.mrb[0].mxu0
        %v2051 = vadd.f32 %v1858, %v2050
        %v2052 = vpop.f32.mrb[0].mxu0
        %2053 = vmatprep.mubr.f32.mxu0 0.0
        %v2054 = vand.u32 %v1153, 4294901760
        %2055 = vmatmul.mubr.f32.gmra.mrb[0].mxu0 %v2054
        %v2056 = vpop.f32.mrb[0].mxu0
        %v2057 = vadd.f32 %v1866, %v2056
        %v2058 = vpop.f32.mrb[0].mxu0
        %2059 = vmatprep.mubr.f32.mxu0 0.0
        %v2060 = vand.u32 %v1156, 4294901760
        %2061 = vmatmul.mubr.f32.gmra.mrb[0].mxu0 %v2060
        %v2062 = vpop.f32.mrb[0].mxu0
        %v2063 = vadd.f32 %v1874, %v2062
        %v2064 = vpop.f32.mrb[0].mxu0
        %2065 = vmatprep.mubr.f32.mxu0 0.0
        %v2066 = vand.u32 %v1159, 4294901760
        %2067 = vmatmul.mubr.f32.gmra.mrb[0].mxu0 %v2066
        %v2068 = vpop.f32.mrb[0].mxu0
        %v2069 = vadd.f32 %v1882, %v2068
        %v2070 = vpop.f32.mrb[0].mxu0
        %2071 = vmatprep.mubr.f32.mxu0 0.0
        %v2072 = vand.u32 %v1162, 4294901760
        %2073 = vmatmul.mubr.f32.gmra.mrb[0].mxu0 %v2072
        %v2074 = vpop.f32.mrb[0].mxu0
        %v2075 = vadd.f32 %v1890, %v2074
        %v2076 = vpop.f32.mrb[0].mxu0
        %2077 = vmatprep.mubr.f32.mxu0 0.0
        %v2078 = vand.u32 %v1165, 4294901760
        %2079 = vmatmul.mubr.f32.gmra.mrb[0].mxu0 %v2078
        %v2080 = vpop.f32.mrb[0].mxu0
        %v2081 = vadd.f32 %v1898, %v2080
        %v2082 = vpop.f32.mrb[0].mxu0
        %2083 = vmatprep.mubr.f32.mxu0 0.0
        %v2084 = vand.u32 %v1168, 4294901760
        %2085 = vmatmul.mubr.f32.gmra.mrb[0].mxu0 %v2084
        %v2086 = vpop.f32.mrb[0].mxu0
        %v2087 = vadd.f32 %v1906, %v2086
        %v2088 = vpop.f32.mrb[0].mxu0
        %2089 = vmatprep.mubr.f32.mxu0 0.0
        %v2090 = vand.u32 %v1171, 4294901760
        %2091 = vmatmul.mubr.f32.gmra.mrb[0].mxu0 %v2090
        %v2092 = vpop.f32.mrb[0].mxu0
        %v2093 = vadd.f32 %v1914, %v2092
        %v2094 = vpop.f32.mrb[0].mxu0
        %2095 = vmatprep.mubr.f32.mxu0 0.0
        %v2096 = vand.u32 %v1174, 4294901760
        %2097 = vmatmul.mubr.f32.gmra.mrb[0].mxu0 %v2096
        %v2098 = vpop.f32.mrb[0].mxu0
        %v2099 = vadd.f32 %v1922, %v2098
        %v2100 = vpop.f32.mrb[0].mxu0
        %2101 = vmatprep.mubr.f32.mxu0 0.0
        %v2102 = vand.u32 %v1177, 4294901760
        %2103 = vmatmul.mubr.f32.gmra.mrb[0].mxu0 %v2102
        %v2104 = vpop.f32.mrb[0].mxu0
        %v2105 = vadd.f32 %v1930, %v2104
        %v2106 = vpop.f32.mrb[0].mxu0
        %2107 = vmatprep.mubr.f32.mxu0 0.0
        %v2108 = vand.u32 %v1180, 4294901760
        %2109 = vmatmul.mubr.f32.gmra.mrb[0].mxu0 %v2108
        %v2110 = vpop.f32.mrb[0].mxu0
        %v2111 = vadd.f32 %v1938, %v2110
        %v2112 = vpop.f32.mrb[0].mxu0
        %2113 = vmatprep.mubr.f32.mxu0 0.0
        %v2114 = vand.u32 %v1183, 4294901760
        %2115 = vmatmul.mubr.f32.gmra.mrb[0].mxu0 %v2114
        %v2116 = vpop.f32.mrb[0].mxu0
        %v2117 = vadd.f32 %v1946, %v2116
        %v2118 = vpop.f32.mrb[0].mxu0
        %2119 = vmatprep.mubr.f32.mxu0 0.0
        %v2120 = vand.u32 %v1186, 4294901760
        %2121 = vmatmul.mubr.f32.gmra.mrb[0].mxu0 %v2120
        %v2122 = vpop.f32.mrb[0].mxu0
        %v2123 = vadd.f32 %v1954, %v2122
        %v2124 = vpop.f32.mrb[0].mxu0
        %2125 = vmatprep.mubr.f32.mxu0 0.0
        %v2126 = vand.u32 %v1189, 4294901760
        %2127 = vmatmul.mubr.f32.gmra.mrb[0].mxu0 %v2126
        %v2128 = vpop.f32.mrb[0].mxu0
        %v2129 = vadd.f32 %v1962, %v2128
        %v2130 = vpop.f32.mrb[0].mxu0
        %2131 = vdwg.mxu0
        %2132 = vmatprep.subr.mxu0 0.0
        %v2133 = vand.u32 %v226, 4294901760
        %2134 = vmatpush1.msra.mxu0 %v2133
        %2135 = vmatprep.subr.mxu0 0.0
        %v2136 = vand.u32 %v227, 4294901760
        %2137 = vmatpush1.msra.mxu0 %v2136
        %2138 = vmatprep.subr.mxu0 0.0
        %2139 = vmatpush1.msra.mxu0 0.0
        %2140 = vmatprep.subr.mxu0 0.0
        %2141 = vmatpush1.msra.mxu0 0.0
        %2142 = vmatprep.subr.mxu0 0.0
        %2143 = vmatpush1.msra.mxu0 0.0
        %2144 = vmatprep.subr.mxu0 0.0
        %2145 = vmatpush1.msra.mxu0 0.0
        %2146 = vmatprep.subr.mxu0 0.0
        %2147 = vmatpush1.msra.mxu0 0.0
        %2148 = vmatprep.subr.mxu0 0.0
        %2149 = vmatpush1.msra.mxu0 0.0
        %2150 = vmatprep.subr.mxu0 0.0
        %2151 = vmatpush1.msra.mxu0 0.0
        %2152 = vmatprep.subr.mxu0 0.0
        %2153 = vmatpush1.msra.mxu0 0.0
        %2154 = vmatprep.subr.mxu0 0.0
        %2155 = vmatpush1.msra.mxu0 0.0
        %2156 = vmatprep.subr.mxu0 0.0
        %2157 = vmatpush1.msra.mxu0 0.0
        %2158 = vmatprep.subr.mxu0 0.0
        %2159 = vmatpush1.msra.mxu0 0.0
        %2160 = vmatprep.subr.mxu0 0.0
        %2161 = vmatpush1.msra.mxu0 0.0
        %2162 = vmatprep.subr.mxu0 0.0
        %2163 = vmatpush1.msra.mxu0 0.0
        %2164 = vmatprep.subr.mxu0 0.0
        %2165 = vmatpush1.msra.mxu0 0.0
        %2166 = vmatprep.subr.mxu0 0.0
        %2167 = vmatpush1.msra.mxu0 0.0
        %2168 = vmatprep.subr.mxu0 0.0
        %2169 = vmatpush1.msra.mxu0 0.0
        %2170 = vmatprep.subr.mxu0 0.0
        %2171 = vmatpush1.msra.mxu0 0.0
        %2172 = vmatprep.subr.mxu0 0.0
        %2173 = vmatpush1.msra.mxu0 0.0
        %2174 = vmatprep.subr.mxu0 0.0
        %2175 = vmatpush1.msra.mxu0 0.0
        %2176 = vmatprep.subr.mxu0 0.0
        %2177 = vmatpush1.msra.mxu0 0.0
        %2178 = vmatprep.subr.mxu0 0.0
        %2179 = vmatpush1.msra.mxu0 0.0
        %2180 = vmatprep.subr.mxu0 0.0
        %2181 = vmatpush1.msra.mxu0 0.0
        %2182 = vmatprep.subr.mxu0 0.0
        %2183 = vmatpush1.msra.mxu0 0.0
        %2184 = vmatprep.subr.mxu0 0.0
        %2185 = vmatpush1.msra.mxu0 0.0
        %2186 = vmatprep.subr.mxu0 0.0
        %2187 = vmatpush1.msra.mxu0 0.0
        %2188 = vmatprep.subr.mxu0 0.0
        %2189 = vmatpush1.msra.mxu0 0.0
        %2190 = vmatprep.subr.mxu0 0.0
        %2191 = vmatpush1.msra.mxu0 0.0
        %2192 = vmatprep.subr.mxu0 0.0
        %2193 = vmatpush1.msra.mxu0 0.0
        %2194 = vmatprep.subr.mxu0 0.0
        %2195 = vmatpush1.msra.mxu0 0.0
        %2196 = vmatprep.subr.mxu0 0.0
        %2197 = vmatpush1.msra.mxu0 0.0
        %2198 = vmatprep.mubr.f32.mxu0 0.0
        %v2199 = vand.u32 %v1144, 4294901760
        %2200 = vmatmul.mubr.f32.gmra.mrb[0].mxu0 %v2199
        %v2201 = vpop.f32.mrb[0].mxu0
        %v2202 = vadd.f32 %v2039, %v2201
        %v2203 = vpop.f32.mrb[0].mxu0
        %2204 = vmatprep.mubr.f32.mxu0 0.0
        %v2205 = vand.u32 %v1147, 4294901760
        %2206 = vmatmul.mubr.f32.gmra.mrb[0].mxu0 %v2205
        %v2207 = vpop.f32.mrb[0].mxu0
        %v2208 = vadd.f32 %v2045, %v2207
        %v2209 = vpop.f32.mrb[0].mxu0
        %2210 = vmatprep.mubr.f32.mxu0 0.0
        %v2211 = vand.u32 %v1150, 4294901760
        %2212 = vmatmul.mubr.f32.gmra.mrb[0].mxu0 %v2211
        %v2213 = vpop.f32.mrb[0].mxu0
        %v2214 = vadd.f32 %v2051, %v2213
        %v2215 = vpop.f32.mrb[0].mxu0
        %2216 = vmatprep.mubr.f32.mxu0 0.0
        %v2217 = vand.u32 %v1153, 4294901760
        %2218 = vmatmul.mubr.f32.gmra.mrb[0].mxu0 %v2217
        %v2219 = vpop.f32.mrb[0].mxu0
        %v2220 = vadd.f32 %v2057, %v2219
        %v2221 = vpop.f32.mrb[0].mxu0
        %2222 = vmatprep.mubr.f32.mxu0 0.0
        %v2223 = vand.u32 %v1156, 4294901760
        %2224 = vmatmul.mubr.f32.gmra.mrb[0].mxu0 %v2223
        %v2225 = vpop.f32.mrb[0].mxu0
        %v2226 = vadd.f32 %v2063, %v2225
        %v2227 = vpop.f32.mrb[0].mxu0
        %2228 = vmatprep.mubr.f32.mxu0 0.0
        %v2229 = vand.u32 %v1159, 4294901760
        %2230 = vmatmul.mubr.f32.gmra.mrb[0].mxu0 %v2229
        %v2231 = vpop.f32.mrb[0].mxu0
        %v2232 = vadd.f32 %v2069, %v2231
        %v2233 = vpop.f32.mrb[0].mxu0
        %2234 = vmatprep.mubr.f32.mxu0 0.0
        %v2235 = vand.u32 %v1162, 4294901760
        %2236 = vmatmul.mubr.f32.gmra.mrb[0].mxu0 %v2235
        %v2237 = vpop.f32.mrb[0].mxu0
        %v2238 = vadd.f32 %v2075, %v2237
        %v2239 = vpop.f32.mrb[0].mxu0
        %2240 = vmatprep.mubr.f32.mxu0 0.0
        %v2241 = vand.u32 %v1165, 4294901760
        %2242 = vmatmul.mubr.f32.gmra.mrb[0].mxu0 %v2241
        %v2243 = vpop.f32.mrb[0].mxu0
        %v2244 = vadd.f32 %v2081, %v2243
        %v2245 = vpop.f32.mrb[0].mxu0
        %2246 = vmatprep.mubr.f32.mxu0 0.0
        %v2247 = vand.u32 %v1168, 4294901760
        %2248 = vmatmul.mubr.f32.gmra.mrb[0].mxu0 %v2247
        %v2249 = vpop.f32.mrb[0].mxu0
        %v2250 = vadd.f32 %v2087, %v2249
        %v2251 = vpop.f32.mrb[0].mxu0
        %2252 = vmatprep.mubr.f32.mxu0 0.0
        %v2253 = vand.u32 %v1171, 4294901760
        %2254 = vmatmul.mubr.f32.gmra.mrb[0].mxu0 %v2253
        %v2255 = vpop.f32.mrb[0].mxu0
        %v2256 = vadd.f32 %v2093, %v2255
        %v2257 = vpop.f32.mrb[0].mxu0
        %2258 = vmatprep.mubr.f32.mxu0 0.0
        %v2259 = vand.u32 %v1174, 4294901760
        %2260 = vmatmul.mubr.f32.gmra.mrb[0].mxu0 %v2259
        %v2261 = vpop.f32.mrb[0].mxu0
        %v2262 = vadd.f32 %v2099, %v2261
        %v2263 = vpop.f32.mrb[0].mxu0
        %2264 = vmatprep.mubr.f32.mxu0 0.0
        %v2265 = vand.u32 %v1177, 4294901760
        %2266 = vmatmul.mubr.f32.gmra.mrb[0].mxu0 %v2265
        %v2267 = vpop.f32.mrb[0].mxu0
        %v2268 = vadd.f32 %v2105, %v2267
        %v2269 = vpop.f32.mrb[0].mxu0
        %2270 = vmatprep.mubr.f32.mxu0 0.0
        %v2271 = vand.u32 %v1180, 4294901760
        %2272 = vmatmul.mubr.f32.gmra.mrb[0].mxu0 %v2271
        %v2273 = vpop.f32.mrb[0].mxu0
        %v2274 = vadd.f32 %v2111, %v2273
        %v2275 = vpop.f32.mrb[0].mxu0
        %2276 = vmatprep.mubr.f32.mxu0 0.0
        %v2277 = vand.u32 %v1183, 4294901760
        %2278 = vmatmul.mubr.f32.gmra.mrb[0].mxu0 %v2277
        %v2279 = vpop.f32.mrb[0].mxu0
        %v2280 = vadd.f32 %v2117, %v2279
        %v2281 = vpop.f32.mrb[0].mxu0
        %2282 = vmatprep.mubr.f32.mxu0 0.0
        %v2283 = vand.u32 %v1186, 4294901760
        %2284 = vmatmul.mubr.f32.gmra.mrb[0].mxu0 %v2283
        %v2285 = vpop.f32.mrb[0].mxu0
        %v2286 = vadd.f32 %v2123, %v2285
        %v2287 = vpop.f32.mrb[0].mxu0
        %2288 = vmatprep.mubr.f32.mxu0 0.0
        %v2289 = vand.u32 %v1189, 4294901760
        %2290 = vmatmul.mubr.f32.gmra.mrb[0].mxu0 %v2289
        %v2291 = vpop.f32.mrb[0].mxu0
        %v2292 = vadd.f32 %v2129, %v2291
        %v2293 = vpop.f32.mrb[0].mxu0
        %2294 = vdwg.mxu0
        %2295 = vxpose.xlu0.b32.start [1/16] %v2202, 128
        %2296 = vxpose.xlu0.b32.cont [2/16] %v2208, 128
        %2297 = vxpose.xlu0.b32.cont [3/16] %v2214, 128
        %2298 = vxpose.xlu0.b32.cont [4/16] %v2220, 128
        %2299 = vxpose.xlu0.b32.cont [5/16] 0.0, 128
        %2300 = vxpose.xlu0.b32.cont [6/16] 0.0, 128
        %2301 = vxpose.xlu0.b32.cont [7/16] 0.0, 128
        %2302 = vxpose.xlu0.b32.cont [8/16] 0.0, 128
        %2303 = vxpose.xlu0.b32.cont [9/16] 0.0, 128
        %2304 = vxpose.xlu0.b32.cont [10/16] 0.0, 128
        %2305 = vxpose.xlu0.b32.cont [11/16] 0.0, 128
        %2306 = vxpose.xlu0.b32.cont [12/16] 0.0, 128
        %2307 = vxpose.xlu0.b32.cont [13/16] 0.0, 128
        %2308 = vxpose.xlu0.b32.cont [14/16] 0.0, 128
        %2309 = vxpose.xlu0.b32.cont [15/16] 0.0, 128
        %2310 = vxpose.xlu0.b32.end [16/16] 0.0, 128
        %v2311 = vpop.trf.xlu0
        %v2312 = vpop.trf.xlu0
        %v2313 = vpop.trf.xlu0
        %v2314 = vpop.trf.xlu0
        %v2315 = vpop.trf.xlu0
        %v2316 = vpop.trf.xlu0
        %v2317 = vpop.trf.xlu0
        %v2318 = vpop.trf.xlu0
        %v2319 = vpop.trf.xlu0
        %v2320 = vpop.trf.xlu0
        %v2321 = vpop.trf.xlu0
        %v2322 = vpop.trf.xlu0
        %v2323 = vpop.trf.xlu0
        %v2324 = vpop.trf.xlu0
        %v2325 = vpop.trf.xlu0
        %v2326 = vpop.trf.xlu0
        %2327 = vxpose.xlu0.b32.start [1/16] %v2226, 128
        %2328 = vxpose.xlu0.b32.cont [2/16] %v2232, 128
        %2329 = vxpose.xlu0.b32.cont [3/16] %v2238, 128
        %2330 = vxpose.xlu0.b32.cont [4/16] %v2244, 128
        %2331 = vxpose.xlu0.b32.cont [5/16] 0.0, 128
        %2332 = vxpose.xlu0.b32.cont [6/16] 0.0, 128
        %2333 = vxpose.xlu0.b32.cont [7/16] 0.0, 128
        %2334 = vxpose.xlu0.b32.cont [8/16] 0.0, 128
        %2335 = vxpose.xlu0.b32.cont [9/16] 0.0, 128
        %2336 = vxpose.xlu0.b32.cont [10/16] 0.0, 128
        %2337 = vxpose.xlu0.b32.cont [11/16] 0.0, 128
        %2338 = vxpose.xlu0.b32.cont [12/16] 0.0, 128
        %2339 = vxpose.xlu0.b32.cont [13/16] 0.0, 128
        %2340 = vxpose.xlu0.b32.cont [14/16] 0.0, 128
        %2341 = vxpose.xlu0.b32.cont [15/16] 0.0, 128
        %2342 = vxpose.xlu0.b32.end [16/16] 0.0, 128
        %v2343 = vpop.trf.xlu0
        %v2344 = vpop.trf.xlu0
        %v2345 = vpop.trf.xlu0
        %v2346 = vpop.trf.xlu0
        %v2347 = vpop.trf.xlu0
        %v2348 = vpop.trf.xlu0
        %v2349 = vpop.trf.xlu0
        %v2350 = vpop.trf.xlu0
        %v2351 = vpop.trf.xlu0
        %v2352 = vpop.trf.xlu0
        %v2353 = vpop.trf.xlu0
        %v2354 = vpop.trf.xlu0
        %v2355 = vpop.trf.xlu0
        %v2356 = vpop.trf.xlu0
        %v2357 = vpop.trf.xlu0
        %v2358 = vpop.trf.xlu0
        %2359 = vxpose.xlu0.b32.start [1/16] %v2250, 128
        %2360 = vxpose.xlu0.b32.cont [2/16] %v2256, 128
        %2361 = vxpose.xlu0.b32.cont [3/16] %v2262, 128
        %2362 = vxpose.xlu0.b32.cont [4/16] %v2268, 128
        %2363 = vxpose.xlu0.b32.cont [5/16] 0.0, 128
        %2364 = vxpose.xlu0.b32.cont [6/16] 0.0, 128
        %2365 = vxpose.xlu0.b32.cont [7/16] 0.0, 128
        %2366 = vxpose.xlu0.b32.cont [8/16] 0.0, 128
        %2367 = vxpose.xlu0.b32.cont [9/16] 0.0, 128
        %2368 = vxpose.xlu0.b32.cont [10/16] 0.0, 128
        %2369 = vxpose.xlu0.b32.cont [11/16] 0.0, 128
        %2370 = vxpose.xlu0.b32.cont [12/16] 0.0, 128
        %2371 = vxpose.xlu0.b32.cont [13/16] 0.0, 128
        %2372 = vxpose.xlu0.b32.cont [14/16] 0.0, 128
        %2373 = vxpose.xlu0.b32.cont [15/16] 0.0, 128
        %2374 = vxpose.xlu0.b32.end [16/16] 0.0, 128
        %v2375 = vpop.trf.xlu0
        %v2376 = vpop.trf.xlu0
        %v2377 = vpop.trf.xlu0
        %v2378 = vpop.trf.xlu0
        %v2379 = vpop.trf.xlu0
        %v2380 = vpop.trf.xlu0
        %v2381 = vpop.trf.xlu0
        %v2382 = vpop.trf.xlu0
        %v2383 = vpop.trf.xlu0
        %v2384 = vpop.trf.xlu0
        %v2385 = vpop.trf.xlu0
        %v2386 = vpop.trf.xlu0
        %v2387 = vpop.trf.xlu0
        %v2388 = vpop.trf.xlu0
        %v2389 = vpop.trf.xlu0
        %v2390 = vpop.trf.xlu0
        %2391 = vxpose.xlu0.b32.start [1/16] %v2274, 128
        %2392 = vxpose.xlu0.b32.cont [2/16] %v2280, 128
        %2393 = vxpose.xlu0.b32.cont [3/16] %v2286, 128
        %2394 = vxpose.xlu0.b32.cont [4/16] %v2292, 128
        %2395 = vxpose.xlu0.b32.cont [5/16] 0.0, 128
        %2396 = vxpose.xlu0.b32.cont [6/16] 0.0, 128
        %2397 = vxpose.xlu0.b32.cont [7/16] 0.0, 128
        %2398 = vxpose.xlu0.b32.cont [8/16] 0.0, 128
        %2399 = vxpose.xlu0.b32.cont [9/16] 0.0, 128
        %2400 = vxpose.xlu0.b32.cont [10/16] 0.0, 128
        %2401 = vxpose.xlu0.b32.cont [11/16] 0.0, 128
        %2402 = vxpose.xlu0.b32.cont [12/16] 0.0, 128
        %2403 = vxpose.xlu0.b32.cont [13/16] 0.0, 128
        %2404 = vxpose.xlu0.b32.cont [14/16] 0.0, 128
        %2405 = vxpose.xlu0.b32.cont [15/16] 0.0, 128
        %2406 = vxpose.xlu0.b32.end [16/16] 0.0, 128
        %v2407 = vpop.trf.xlu0
        %v2408 = vpop.trf.xlu0
        %v2409 = vpop.trf.xlu0
        %v2410 = vpop.trf.xlu0
        %v2411 = vpop.trf.xlu0
        %v2412 = vpop.trf.xlu0
        %v2413 = vpop.trf.xlu0
        %v2414 = vpop.trf.xlu0
        %v2415 = vpop.trf.xlu0
        %v2416 = vpop.trf.xlu0
        %v2417 = vpop.trf.xlu0
        %v2418 = vpop.trf.xlu0
        %v2419 = vpop.trf.xlu0
        %v2420 = vpop.trf.xlu0
        %v2421 = vpop.trf.xlu0
        %v2422 = vpop.trf.xlu0
        %vm2423 = vcmask 261120
        %2424 = vst.msk [vmem:[%s217] sm:$0xff] %vm2423, %v2311
        %2425 = vst.msk [vmem:[%s217 + $0x8] sm:$0xff] %vm2423, %v2312
        %2426 = vst.msk [vmem:[%s217 + $0x10] sm:$0xff] %vm2423, %v2313
        %2427 = vst.msk [vmem:[%s217 + $0x18] sm:$0xff] %vm2423, %v2314
        %2428 = vst.msk [vmem:[%s217 + $0x20] sm:$0xff] %vm2423, %v2343
        %2429 = vst.msk [vmem:[%s217 + $0x28] sm:$0xff] %vm2423, %v2344
        %2430 = vst.msk [vmem:[%s217 + $0x30] sm:$0xff] %vm2423, %v2345
        %2431 = vst.msk [vmem:[%s217 + $0x38] sm:$0xff] %vm2423, %v2346
        %2432 = vst.msk [vmem:[%s217 + $0x40] sm:$0xff] %vm2423, %v2375
        %2433 = vst.msk [vmem:[%s217 + $0x48] sm:$0xff] %vm2423, %v2376
        %2434 = vst.msk [vmem:[%s217 + $0x50] sm:$0xff] %vm2423, %v2377
        %2435 = vst.msk [vmem:[%s217 + $0x58] sm:$0xff] %vm2423, %v2378
        %2436 = vst.msk [vmem:[%s217 + $0x60] sm:$0xff] %vm2423, %v2407
        %2437 = vst.msk [vmem:[%s217 + $0x68] sm:$0xff] %vm2423, %v2408
        %2438 = vst.msk [vmem:[%s217 + $0x70] sm:$0xff] %vm2423, %v2409
        %2439 = vst.msk [vmem:[%s217 + $0x78] sm:$0xff] %vm2423, %v2410
        %s2440 = sand.u32 %s97, 1
        %s2441 = scalar_lea.sflag [#allocation4], %s2440
        %s2442 = sand.u32 %s97, 1
        %s2443 = smul.addr %s2442, 128
        %s2444 = scalar_lea.vmem [#allocation8], %s2443
        // Predicated region
        $region45: #{tpu_custom_call.1} parent=31 // pred_check
          %p2445 = pneg %p107
        $region46: #{tpu_custom_call.1} parent=31 // pred_check_branch
          %2447 = sbr.rel (%p2445) target = $region48
        $region47: #{tpu_custom_call.1} parent=31 // pred_region
          %s2449 = ssub.s32 2048, 2048
          %2450 = vsyncadd %s2441, %s2449
          %s2451 = smul.addr %s21, 16
          %s2452 = smul.addr %s2451, 128
          %s2453 = scalar_lea.hbm %s3, %s2452
          %s2454 = sshll.u32 %s2444, 4
          %s2455 = int_to_ptr.vmem [resolvable:$true] %s2454
          %2460 = dma.vmem_to_hbm [thread:$0]  %s2455, 2048, %s2453, %s2441, 128, 128, 8
        $region48: #{tpu_custom_call.1} parent=31 // pred_fallthru
          _
      $region32: #{tpu_custom_call.1} parent=5 // pred_fallthru
        _
      %p2461 = scmp.le.s32.totalorder 2, %s16
      // Predicated region
      $region49: #{tpu_custom_call.1} parent=5 // pred_check
        %p2462 = pneg %p2461
      $region50: #{tpu_custom_call.1} parent=5 // pred_check_branch
        %2464 = sbr.rel (%p2462) target = $region52
      $region51: #{tpu_custom_call.1} parent=5 // pred_region
        %s2465 = ssub.s32 %s16, 2
        // Predicated region
        $region53: #{tpu_custom_call.1} parent=51 // pred_check
          %p2466 = pneg %p113
        $region54: #{tpu_custom_call.1} parent=51 // pred_check_branch
          %2468 = sbr.rel (%p2466) target = $region56
        $region55: #{tpu_custom_call.1} parent=51 // pred_region
          %s2469 = sand.u32 %s98, 1
          %s2470 = scalar_lea.sflag [#allocation4], %s2469
          %s2471 = sand.u32 %s98, 1
          %s2472 = smul.addr %s2471, 128
          %s2473 = scalar_lea.vmem [#allocation8], %s2472
          %2474 = dma.done %s2470, 2048
        $region56: #{tpu_custom_call.1} parent=51 // pred_fallthru
          _
      $region52: #{tpu_custom_call.1} parent=5 // pred_fallthru
        _
    $region6: #{tpu_custom_call.1} parent=1 // loop_footer
      %s20 = sadd.s32 1, %s16
    $region7: #{tpu_custom_call.1} parent=1 // loop_footer_branch
      %15 = sbr.rel target = $region3
    $region8: #{tpu_custom_call.1} parent=1 // loop_exit
      _
    %2475 = vsyncpa [#allocation3], 1
    %s2476 = scalar_lea.sflag [#allocation3], 1
    %2477 = vsyncpa %s2476, 1
    %2478 = vsyncpa [#allocation6], 1
    %2479 = vsyncpa [#allocation4], 1
    %s2480 = scalar_lea.sflag [#allocation4], 1
    %2481 = vsyncpa %s2480, 1

</llo_original>
